<compile_context>
chip_gen: v6e
topology: v6e:2x2x1
jax: 0.10.0
libtpu: 0.0.40
codegen_flags: <defaults>
</compile_context>

<pallas_src>
import functools

import jax
import jax.numpy as jnp
from jax.experimental import pallas as pl
from jax.experimental.pallas import tpu as pltpu


LN_EPS = 1e-5  # PyTorch LayerNorm default eps


def _round_up(a, m):
    return ((a + m - 1) // m) * m


def _patch_embed_kernel(p_ref, w_ref, b_ref, g_ref, beta_ref, o_ref):
    # p_ref:  (tm, Kpad)  bf16 patches tile
    # w_ref:  (Kpad, E)   bf16 flattened conv weight (full, K zero-padded)
    # b_ref/g_ref/beta_ref: (1, E) f32 conv bias / LN gamma / LN beta
    # o_ref:  (tm, E)     f32
    y = jnp.dot(p_ref[...], w_ref[...], preferred_element_type=jnp.float32)
    y = y + b_ref[...]
    mean = jnp.mean(y, axis=-1, keepdims=True)
    cen = y - mean
    var = jnp.mean(cen * cen, axis=-1, keepdims=True)
    yhat = cen * jax.lax.rsqrt(var + LN_EPS)
    o_ref[...] = yhat * g_ref[...] + beta_ref[...]


@functools.partial(jax.jit, static_argnames=("tm",))
def patch_embed_3d(x, w, b, gamma, beta, *, tm=512):
    """x: (B, C, D, H, W) float32; w: (E, C, 3, 3, 3); b/gamma/beta: (E,)."""
    B, C, D, H, W = x.shape
    E = w.shape[0]
    Do, Ho, Wo = (D + 2 - 3) // 2 + 1, (H + 2 - 3) // 2 + 1, (W + 2 - 3) // 2 + 1
    K = C * 27
    M = B * Do * Ho * Wo
    Kpad = _round_up(K, 128)

    # Keep the row tile large, but keep >= 2 grid steps when possible
    # (v7x megacore shards the "parallel" axis across its 2 TensorCores).
    tm_eff = min(tm, _round_up(max(-(-M // 2), 8), 8))
    Mpad = _round_up(M, tm_eff)

    # ---- im2col, spatial-major, bf16 (no transpose of the big patch matrix) ----
    xt = jnp.transpose(x.astype(jnp.bfloat16), (0, 2, 3, 4, 1))     # (B,D,H,W,C)
    xp = jnp.pad(xt, ((0, 0), (1, 1), (1, 1), (1, 1), (0, 0)))
    taps = []
    for kd in range(3):
        for kh in range(3):
            for kw in range(3):
                taps.append(
                    xp[:, kd:kd + 2 * Do:2, kh:kh + 2 * Ho:2, kw:kw + 2 * Wo:2, :]
                )
    # (B, Do, Ho, Wo, 27, C) -> (M, K); feature order = (kd, kh, kw, c)
    p = jnp.stack(taps, axis=4).reshape(M, K)
    p = jnp.pad(p, ((0, Mpad - M), (0, Kpad - K)))                  # zero pad M, K

    # Flatten the (tiny) conv weight in the matching (kd, kh, kw, c) order.
    w_flat = jnp.transpose(w, (2, 3, 4, 1, 0)).reshape(K, E).astype(jnp.bfloat16)
    w_flat = jnp.pad(w_flat, ((0, Kpad - K), (0, 0)))               # (Kpad, E)
    b2 = b.reshape(1, E).astype(jnp.float32)
    g2 = gamma.reshape(1, E).astype(jnp.float32)
    beta2 = beta.reshape(1, E).astype(jnp.float32)

    grid = (Mpad // tm_eff,)
    cost = pl.CostEstimate(
        flops=2 * Mpad * Kpad * E,
        transcendentals=0,
        bytes_accessed=Mpad * Kpad * 2 + Kpad * E * 2 + Mpad * E * 4,
    )

    out = pl.pallas_call(
        _patch_embed_kernel,
        out_shape=jax.ShapeDtypeStruct((Mpad, E), jnp.float32),
        grid_spec=pltpu.PrefetchScalarGridSpec(
            num_scalar_prefetch=0,
            grid=grid,
            in_specs=[
                pl.BlockSpec((tm_eff, Kpad), lambda i: (i, 0)),
                pl.BlockSpec((Kpad, E), lambda i: (0, 0)),
                pl.BlockSpec((1, E), lambda i: (0, 0)),
                pl.BlockSpec((1, E), lambda i: (0, 0)),
                pl.BlockSpec((1, E), lambda i: (0, 0)),
            ],
            out_specs=pl.BlockSpec((tm_eff, E), lambda i: (i, 0)),
        ),
        compiler_params=pltpu.CompilerParams(
            dimension_semantics=("parallel",),
            vmem_limit_bytes=32 * 1024 * 1024,
        ),
        cost_estimate=cost,
    )(p, w_flat, b2, g2, beta2)

    out = out[:M].reshape(B, Do * Ho * Wo, E)
    return out, (Do, Ho, Wo)


def _reference(x, w, b, gamma, beta):
    """Pure-JAX f32 reference mirroring the PyTorch forward."""
    B = x.shape[0]
    E = w.shape[0]
    y = jax.lax.conv_general_dilated(
        x, w, window_strides=(2, 2, 2),
        padding=((1, 1), (1, 1), (1, 1)),
        dimension_numbers=("NCDHW", "OIDHW", "NCDHW"),
    ) + b.reshape(1, E, 1, 1, 1)
    Do, Ho, Wo = y.shape[2:]
    y = y.reshape(B, E, -1).transpose(0, 2, 1)          # (B, N, E)
    mean = jnp.mean(y, axis=-1, keepdims=True)
    var = jnp.mean((y - mean) ** 2, axis=-1, keepdims=True)
    yhat = (y - mean) / jnp.sqrt(var + LN_EPS)
    return yhat * gamma + beta, (Do, Ho, Wo)


if __name__ == "__main__":
    B, C, D, H, W = 2, 4, 16, 16, 16
    E = 32

    key = jax.random.PRNGKey(0)
    kx, kw_, kb = jax.random.split(key, 3)
    x = jax.random.normal(kx, (B, C, D, H, W), dtype=jnp.float32)
    w = jax.random.normal(kw_, (E, C, 3, 3, 3), dtype=jnp.float32) * 0.05
    b = jax.random.normal(kb, (E,), dtype=jnp.float32) * 0.02
    gamma = jnp.ones((E,), dtype=jnp.float32)   # LayerNorm default weight
    beta = jnp.zeros((E,), dtype=jnp.float32)   # LayerNorm default bias

    out, dims = patch_embed_3d(x, w, b, gamma, beta)
    out = jax.block_until_ready(out)

    ref, ref_dims = _reference(x, w, b, gamma, beta)
    assert dims == tuple(int(d) for d in ref_dims), (dims, ref_dims)
    assert out.shape == (B, dims[0] * dims[1] * dims[2], E), out.shape
    # bf16 patch/weight path -> loosened tolerance vs. the f32 reference.
    max_err = float(jnp.max(jnp.abs(out - ref)))
    assert jnp.allclose(out, ref, atol=5e-2, rtol=5e-2), max_err

    print("KERNEL_OK")
</pallas_src>

<mosaic_0001>
module attributes {stable_mosaic.version = 11 : i64} {
  func.func @_patch_embed_kernel(%arg0: i32, %arg1: memref<512x128xbf16, #tpu.memory_space<vmem>>, %arg2: memref<128x32xbf16, #tpu.memory_space<vmem>>, %arg3: memref<1x32xf32, #tpu.memory_space<vmem>>, %arg4: memref<1x32xf32, #tpu.memory_space<vmem>>, %arg5: memref<1x32xf32, #tpu.memory_space<vmem>>, %arg6: memref<512x32xf32, #tpu.memory_space<vmem>>) attributes {dimension_semantics = [#tpu.dimension_semantics<parallel>], iteration_bounds = array<i64: 2>, scalar_prefetch = 0 : i64, scratch_operands = 0 : i64, tpu.core_type = #tpu.core_type<tc>, window_params = [{transform_indices = @transform_0, window_bounds = array<i64: 512, 128>}, {pipeline_mode = #tpu.pipeline_mode<synchronous>, transform_indices = @transform_1, window_bounds = array<i64: 128, 32>}, {pipeline_mode = #tpu.pipeline_mode<synchronous>, transform_indices = @transform_2, window_bounds = array<i64: 1, 32>}, {pipeline_mode = #tpu.pipeline_mode<synchronous>, transform_indices = @transform_3, window_bounds = array<i64: 1, 32>}, {pipeline_mode = #tpu.pipeline_mode<synchronous>, transform_indices = @transform_4, window_bounds = array<i64: 1, 32>}, {transform_indices = @transform_5, window_bounds = array<i64: 512, 32>}]} {
    %c0 = arith.constant 0 : index
    %c0_0 = arith.constant 0 : index
    %0 = vector.load %arg1[%c0, %c0_0] : memref<512x128xbf16, #tpu.memory_space<vmem>>, vector<512x128xbf16>
    %c0_1 = arith.constant 0 : index
    %c0_2 = arith.constant 0 : index
    %1 = vector.load %arg2[%c0_1, %c0_2] : memref<128x32xbf16, #tpu.memory_space<vmem>>, vector<128x32xbf16>
    %cst = arith.constant dense<0.000000e+00> : vector<512x32xf32>
    %2 = tpu.matmul %0, %1, %cst {dimension_numbers = #tpu.dot_dimension_numbers<[1], [0], [0], [1], [0, 0, 1, 1], [], []>} : vector<512x128xbf16>, vector<128x32xbf16>, vector<512x32xf32> -> vector<512x32xf32>
    %c0_3 = arith.constant 0 : index
    %c0_4 = arith.constant 0 : index
    %3 = vector.load %arg3[%c0_3, %c0_4] : memref<1x32xf32, #tpu.memory_space<vmem>>, vector<1x32xf32>
    %4 = vector.broadcast %3 : vector<1x32xf32> to vector<512x32xf32>
    %5 = arith.addf %2, %4 : vector<512x32xf32>
    %cst_5 = arith.constant dense<0.000000e+00> : vector<512xf32>
    %6 = vector.multi_reduction <add>, %5, %cst_5 [1] : vector<512x32xf32> to vector<512xf32>
    %7 = vector.shape_cast %6 : vector<512xf32> to vector<512x1xf32>
    %cst_6 = arith.constant 3.200000e+01 : f32
    %8 = vector.broadcast %cst_6 : f32 to vector<512x1xf32>
    %9 = arith.divf %7, %8 : vector<512x1xf32>
    %10 = vector.broadcast %9 : vector<512x1xf32> to vector<512x32xf32>
    %11 = arith.subf %5, %10 : vector<512x32xf32>
    %12 = arith.mulf %11, %11 : vector<512x32xf32>
    %cst_7 = arith.constant dense<0.000000e+00> : vector<512xf32>
    %13 = vector.multi_reduction <add>, %12, %cst_7 [1] : vector<512x32xf32> to vector<512xf32>
    %14 = vector.shape_cast %13 : vector<512xf32> to vector<512x1xf32>
    %cst_8 = arith.constant 3.200000e+01 : f32
    %15 = vector.broadcast %cst_8 : f32 to vector<512x1xf32>
    %16 = arith.divf %14, %15 : vector<512x1xf32>
    %cst_9 = arith.constant 9.99999974E-6 : f32
    %17 = vector.broadcast %cst_9 : f32 to vector<512x1xf32>
    %18 = arith.addf %16, %17 : vector<512x1xf32>
    %19 = math.rsqrt %18 : vector<512x1xf32>
    %20 = vector.broadcast %19 : vector<512x1xf32> to vector<512x32xf32>
    %21 = arith.mulf %11, %20 : vector<512x32xf32>
    %c0_10 = arith.constant 0 : index
    %c0_11 = arith.constant 0 : index
    %22 = vector.load %arg4[%c0_10, %c0_11] : memref<1x32xf32, #tpu.memory_space<vmem>>, vector<1x32xf32>
    %23 = vector.broadcast %22 : vector<1x32xf32> to vector<512x32xf32>
    %24 = arith.mulf %21, %23 : vector<512x32xf32>
    %c0_12 = arith.constant 0 : index
    %c0_13 = arith.constant 0 : index
    %25 = vector.load %arg5[%c0_12, %c0_13] : memref<1x32xf32, #tpu.memory_space<vmem>>, vector<1x32xf32>
    %26 = vector.broadcast %25 : vector<1x32xf32> to vector<512x32xf32>
    %27 = arith.addf %24, %26 : vector<512x32xf32>
    %c0_14 = arith.constant 0 : index
    %c0_15 = arith.constant 0 : index
    %28 = vector.load %arg6[%c0_14, %c0_15] : memref<512x32xf32, #tpu.memory_space<vmem>>, vector<512x32xf32>
    tpu.vector_store %arg6[%c0_14, %c0_15], %27 {strides = array<i32>} : memref<512x32xf32, #tpu.memory_space<vmem>>, vector<512x32xf32>,
    return
  }
  func.func @transform_0(%arg0: i32) -> (i32, i32) {
    %c0_i32 = arith.constant 0 : i32
    %c0_i32_0 = arith.constant 0 : i32
    return %arg0, %c0_i32 : i32, i32
  }
  func.func @transform_1(%arg0: i32) -> (i32, i32) {
    %c0_i32 = arith.constant 0 : i32
    %c0_i32_0 = arith.constant 0 : i32
    %c0_i32_1 = arith.constant 0 : i32
    return %c0_i32, %c0_i32_0 : i32, i32
  }
  func.func @transform_2(%arg0: i32) -> (i32, i32) {
    %c0_i32 = arith.constant 0 : i32
    %c0_i32_0 = arith.constant 0 : i32
    %c0_i32_1 = arith.constant 0 : i32
    return %c0_i32, %c0_i32_0 : i32, i32
  }
  func.func @transform_3(%arg0: i32) -> (i32, i32) {
    %c0_i32 = arith.constant 0 : i32
    %c0_i32_0 = arith.constant 0 : i32
    %c0_i32_1 = arith.constant 0 : i32
    return %c0_i32, %c0_i32_0 : i32, i32
  }
  func.func @transform_4(%arg0: i32) -> (i32, i32) {
    %c0_i32 = arith.constant 0 : i32
    %c0_i32_0 = arith.constant 0 : i32
    %c0_i32_1 = arith.constant 0 : i32
    return %c0_i32, %c0_i32_0 : i32, i32
  }
  func.func @transform_5(%arg0: i32) -> (i32, i32) {
    %c0_i32 = arith.constant 0 : i32
    %c0_i32_0 = arith.constant 0 : i32
    return %arg0, %c0_i32 : i32, i32
  }
}

</mosaic_0001>

<llo_original>
// kernel: patch_embed_3d.1
$region0: #{patch_embed_3d.1}
  #allocation0 [shape = 'u32[]', space=smem, size = 0x4, offset = 0x4, fixed_abs, tag = 'smem constant byte address 0x4 - core index']
  #allocation1 [shape = 'u32[144,128]{1,0:T(1,128)}', space=vmem, size = 0x12000, scoped, tag = 'internal scratch']
  %s0 = inlined_call_operand.vmem [shape: bf16[1024,128], index: 0, kind: input, shape index: {}]
  %s1 = inlined_call_operand.vmem [shape: bf16[128,32], index: 1, kind: input, shape index: {}]
  %s2 = inlined_call_operand.vmem [shape: f32[1,32], index: 2, kind: input, shape index: {}]
  %s3 = inlined_call_operand.vmem [shape: f32[1,32], index: 3, kind: input, shape index: {}]
  %s4 = inlined_call_operand.vmem [shape: f32[1,32], index: 4, kind: input, shape index: {}]
  %s5 = inlined_call_operand.vmem [shape: f32[1024,32], index: 5, kind: output, shape index: {}]
  %s6 = sld [smem:[#allocation0]]
  $region53: #{patch_embed_3d.1} parent=0
    _
  %s8 = ssub.s32 1, %s6
  %s9 = scalar_select 0, %s8, %s6
  loop: start=0, step=1, limit=4
  $region2: #{patch_embed_3d.1} parent=0 // loop_pre_header
    _
  $region3: #{patch_embed_3d.1} parent=0 // loop_header
    %s11 = sphi 0, %s15
    %p12 = scmp.ge.s32.totalorder %s11, 4
    %s21 = sphi 0, %s23
    %s24 = sphi 0, %s21
    %s25 = sphi 0, %s24
    %s41 = sphi 0, %s25
    %s45 = sphi 0, %s45
    %s47 = sphi 0, %s45
    %s48 = sphi 0, %s47
    %s62 = sphi 0, %s48
    %s66 = sphi 0, %s66
    %s68 = sphi 0, %s66
    %s69 = sphi 0, %s68
    %s83 = sphi 0, %s69
    %s87 = sphi 0, %s87
    %s89 = sphi 0, %s87
    %s90 = sphi 0, %s89
    %s104 = sphi 0, %s90
    %s108 = sphi 0, %s108
    %s110 = sphi 0, %s108
    %s111 = sphi 0, %s110
    %s125 = sphi 0, %s111
    %s131 = sphi 0, %s133
    %s134 = sphi 0, %s131
    %s135 = sphi 0, %s134
    %s151 = sphi 0, %s135
  $region4: #{patch_embed_3d.1} parent=0 // loop_header_branch
    %14 = sbr.rel (%p12) target = $region8
  $region5: #{patch_embed_3d.1} parent=0 // loop_body
    %s16 = ssub.s32 %s11, 1
    %s17 = ssub.s32 %s11, 2
    %s18 = sadd.s32 %s11, 1
    %s19 = ssub.s32 %s11, %s18
    %p20 = scmp.eq.s32.totalorder %s19, 0
    %s22 = sadd.s32 %s21, 1
    %s23 = scalar_select %p20, %s21, %s22
    %p26 = pneg %p20
    %p27 = scmp.eq.s32.totalorder %s11, 1
    %p28 = por %p26, %p27
    %p29 = scmp.ne.s32.totalorder %s21, %s24
    %p30 = scmp.eq.s32.totalorder %s11, 0
    %p31 = por %p29, %p30
    %p32 = scmp.ne.s32.totalorder %s21, %s24
    %p33 = scmp.eq.s32.totalorder %s16, 1
    %p34 = por %p32, %p33
    %p35 = scmp.ne.s32.totalorder %s24, %s25
    %p36 = scmp.eq.s32.totalorder %s16, 0
    %p37 = por %p35, %p36
    %p38 = scmp.ne.s32.totalorder %s24, %s25
    %p39 = scmp.eq.s32.totalorder %s17, 1
    %p40 = por %p38, %p39
    %p42 = scmp.ne.s32.totalorder %s25, %s41
    %p43 = scmp.eq.s32.totalorder %s17, 0
    %p44 = por %p42, %p43
    %s46 = sadd.s32 %s45, 1
    %p49 = scmp.eq.s32.totalorder %s11, 1
    %p50 = scmp.ne.s32.totalorder %s45, %s47
    %p51 = scmp.eq.s32.totalorder %s11, 0
    %p52 = por %p50, %p51
    %p53 = scmp.ne.s32.totalorder %s45, %s47
    %p54 = scmp.eq.s32.totalorder %s16, 1
    %p55 = por %p53, %p54
    %p56 = scmp.ne.s32.totalorder %s47, %s48
    %p57 = scmp.eq.s32.totalorder %s16, 0
    %p58 = por %p56, %p57
    %p59 = scmp.ne.s32.totalorder %s47, %s48
    %p60 = scmp.eq.s32.totalorder %s17, 1
    %p61 = por %p59, %p60
    %p63 = scmp.ne.s32.totalorder %s48, %s62
    %p64 = scmp.eq.s32.totalorder %s17, 0
    %p65 = por %p63, %p64
    %s67 = sadd.s32 %s66, 1
    %p70 = scmp.eq.s32.totalorder %s11, 1
    %p71 = scmp.ne.s32.totalorder %s66, %s68
    %p72 = scmp.eq.s32.totalorder %s11, 0
    %p73 = por %p71, %p72
    %p74 = scmp.ne.s32.totalorder %s66, %s68
    %p75 = scmp.eq.s32.totalorder %s16, 1
    %p76 = por %p74, %p75
    %p77 = scmp.ne.s32.totalorder %s68, %s69
    %p78 = scmp.eq.s32.totalorder %s16, 0
    %p79 = por %p77, %p78
    %p80 = scmp.ne.s32.totalorder %s68, %s69
    %p81 = scmp.eq.s32.totalorder %s17, 1
    %p82 = por %p80, %p81
    %p84 = scmp.ne.s32.totalorder %s69, %s83
    %p85 = scmp.eq.s32.totalorder %s17, 0
    %p86 = por %p84, %p85
    %s88 = sadd.s32 %s87, 1
    %p91 = scmp.eq.s32.totalorder %s11, 1
    %p92 = scmp.ne.s32.totalorder %s87, %s89
    %p93 = scmp.eq.s32.totalorder %s11, 0
    %p94 = por %p92, %p93
    %p95 = scmp.ne.s32.totalorder %s87, %s89
    %p96 = scmp.eq.s32.totalorder %s16, 1
    %p97 = por %p95, %p96
    %p98 = scmp.ne.s32.totalorder %s89, %s90
    %p99 = scmp.eq.s32.totalorder %s16, 0
    %p100 = por %p98, %p99
    %p101 = scmp.ne.s32.totalorder %s89, %s90
    %p102 = scmp.eq.s32.totalorder %s17, 1
    %p103 = por %p101, %p102
    %p105 = scmp.ne.s32.totalorder %s90, %s104
    %p106 = scmp.eq.s32.totalorder %s17, 0
    %p107 = por %p105, %p106
    %s109 = sadd.s32 %s108, 1
    %p112 = scmp.eq.s32.totalorder %s11, 1
    %p113 = scmp.ne.s32.totalorder %s108, %s110
    %p114 = scmp.eq.s32.totalorder %s11, 0
    %p115 = por %p113, %p114
    %p116 = scmp.ne.s32.totalorder %s108, %s110
    %p117 = scmp.eq.s32.totalorder %s16, 1
    %p118 = por %p116, %p117
    %p119 = scmp.ne.s32.totalorder %s110, %s111
    %p120 = scmp.eq.s32.totalorder %s16, 0
    %p121 = por %p119, %p120
    %p122 = scmp.ne.s32.totalorder %s110, %s111
    %p123 = scmp.eq.s32.totalorder %s17, 1
    %p124 = por %p122, %p123
    %p126 = scmp.ne.s32.totalorder %s111, %s125
    %p127 = scmp.eq.s32.totalorder %s17, 0
    %p128 = por %p126, %p127
    %s129 = ssub.s32 %s11, %s18
    %p130 = scmp.eq.s32.totalorder %s129, 0
    %s132 = sadd.s32 %s131, 1
    %s133 = scalar_select %p130, %s131, %s132
    %p136 = pneg %p130
    %p137 = scmp.eq.s32.totalorder %s11, 1
    %p138 = por %p136, %p137
    %p139 = scmp.ne.s32.totalorder %s131, %s134
    %p140 = scmp.eq.s32.totalorder %s11, 0
    %p141 = por %p139, %p140
    %p142 = scmp.ne.s32.totalorder %s131, %s134
    %p143 = scmp.eq.s32.totalorder %s16, 1
    %p144 = por %p142, %p143
    %p145 = scmp.ne.s32.totalorder %s134, %s135
    %p146 = scmp.eq.s32.totalorder %s16, 0
    %p147 = por %p145, %p146
    %p148 = scmp.ne.s32.totalorder %s134, %s135
    %p149 = scmp.eq.s32.totalorder %s17, 1
    %p150 = por %p148, %p149
    %p152 = scmp.ne.s32.totalorder %s135, %s151
    %p153 = scmp.eq.s32.totalorder %s17, 0
    %p154 = por %p152, %p153
    %p155 = scmp.le.s32.totalorder 1, %s11
    %p156 = scmp.lt.s32.totalorder %s11, 3
    %p157 = pnand %p155, %p156
    %p158 = pneg %p157
    // Predicated region
    $region9: #{patch_embed_3d.1} parent=5 // pred_check
      _
    $region10: #{patch_embed_3d.1} parent=5 // pred_check_branch
      %160 = sbr.rel (%p157) target = $region12
    $region11: #{patch_embed_3d.1} parent=5 // pred_region
      %s161 = ssub.s32 %s11, 1
      // Predicated region
      $region13: #{patch_embed_3d.1} parent=11 // pred_check
        %p162 = pneg %p58
      $region14: #{patch_embed_3d.1} parent=11 // pred_check_branch
        %164 = sbr.rel (%p162) target = $region16
      $region15: #{patch_embed_3d.1} parent=11 // pred_region
        _
      $region16: #{patch_embed_3d.1} parent=11 // pred_fallthru
        _
      // Predicated region
      $region17: #{patch_embed_3d.1} parent=11 // pred_check
        %p165 = pneg %p79
      $region18: #{patch_embed_3d.1} parent=11 // pred_check_branch
        %167 = sbr.rel (%p165) target = $region20
      $region19: #{patch_embed_3d.1} parent=11 // pred_region
        _
      $region20: #{patch_embed_3d.1} parent=11 // pred_fallthru
        _
      // Predicated region
      $region21: #{patch_embed_3d.1} parent=11 // pred_check
        %p168 = pneg %p100
      $region22: #{patch_embed_3d.1} parent=11 // pred_check_branch
        %170 = sbr.rel (%p168) target = $region24
      $region23: #{patch_embed_3d.1} parent=11 // pred_region
        _
      $region24: #{patch_embed_3d.1} parent=11 // pred_fallthru
        _
      // Predicated region
      $region25: #{patch_embed_3d.1} parent=11 // pred_check
        %p171 = pneg %p121
      $region26: #{patch_embed_3d.1} parent=11 // pred_check_branch
        %173 = sbr.rel (%p171) target = $region28
      $region27: #{patch_embed_3d.1} parent=11 // pred_region
        _
      $region28: #{patch_embed_3d.1} parent=11 // pred_fallthru
        _
    $region12: #{patch_embed_3d.1} parent=5 // pred_fallthru
      _
    %p174 = scmp.lt.s32.totalorder %s11, 2
    // Predicated region
    $region29: #{patch_embed_3d.1} parent=5 // pred_check
      %p175 = pneg %p174
    $region30: #{patch_embed_3d.1} parent=5 // pred_check_branch
      %177 = sbr.rel (%p175) target = $region32
    $region31: #{patch_embed_3d.1} parent=5 // pred_region
      // Predicated region
      $region33: #{patch_embed_3d.1} parent=31 // pred_check
        %p178 = pneg %p31
      $region34: #{patch_embed_3d.1} parent=31 // pred_check_branch
        %180 = sbr.rel (%p178) target = $region36
      $region35: #{patch_embed_3d.1} parent=31 // pred_region
        %s181 = smul.u32 64, %s11
        %p182 = scmp.lt.s32.totalorder %s181, 127
        %s183 = scalar_select %p182, %s181, 127
        %s184 = smul.addr %s183, 4
        %s185 = scalar_lea.vmem %s0, %s184
        %s186 = smul.u32 64, %s11
      $region36: #{patch_embed_3d.1} parent=31 // pred_fallthru
        _
    $region32: #{patch_embed_3d.1} parent=5 // pred_fallthru
      _
    %p187 = scmp.le.s32.totalorder 1, %s11
    %p188 = scmp.lt.s32.totalorder %s11, 3
    %p189 = pnand %p187, %p188
    %p190 = pneg %p189
    // Predicated region
    $region37: #{patch_embed_3d.1} parent=5 // pred_check
      _
    $region38: #{patch_embed_3d.1} parent=5 // pred_check_branch
      %192 = sbr.rel (%p189) target = $region40
    $region39: #{patch_embed_3d.1} parent=5 // pred_region
      %s193 = ssub.s32 %s11, 1
      %s194 = smul.u32 64, %s16
      %p195 = scmp.lt.s32.totalorder %s194, 127
      %s196 = scalar_select %p195, %s194, 127
      %s197 = smul.addr %s196, 4
      %s198 = scalar_lea.vmem %s0, %s197
      %p199 = pneg %p37
      %p200 = pneg %p34
      %p201 = pneg %p58
      %p202 = pneg %p55
      %p203 = pneg %p79
      %p204 = pneg %p76
      %p205 = pneg %p100
      %p206 = pneg %p97
      %p207 = pneg %p121
      %p208 = pneg %p118
      %p209 = pneg %p147
      %p210 = pneg %p144
      %s211 = smul.u32 64, %s16
      %p212 = scmp.lt.s32.totalorder %s211, 127
      %s213 = scalar_select %p212, %s211, 127
      %s214 = smul.addr %s213, 8
      %s215 = scalar_lea.vmem %s5, %s214
      %s216 = smul.u32 64, %s16
      %p217 = scmp.lt.s32.totalorder %s216, 127
      %s218 = scalar_select %p217, %s216, 127
      %s219 = smul.addr %s218, 4
      %s220 = scalar_lea.vmem %s0, %s219
      %s221 = smul.u32 64, %s16
      %s222 = smul.u32 64, %s16
      %p223 = scmp.lt.s32.totalorder %s222, 127
      %s224 = scalar_select %p223, %s222, 127
      %s225 = smul.addr %s224, 8
      %s226 = scalar_lea.vmem %s5, %s225
      %s227 = smul.u32 64, %s16
      %v229 = vld [vmem:[%s220] sm:$0xf]
      %v230 = vld [vmem:[%s220 + $0x4] sm:$0xf]
      %v231 = vld [vmem:[%s220 + $0x8] sm:$0xf]
      %v232 = vld [vmem:[%s220 + $0xc] sm:$0xf]
      %v233 = vld [vmem:[%s220 + $0x10] sm:$0xf]
      %v234 = vld [vmem:[%s220 + $0x14] sm:$0xf]
      %v235 = vld [vmem:[%s220 + $0x18] sm:$0xf]
      %v236 = vld [vmem:[%s220 + $0x1c] sm:$0xf]
      %v237 = vld [vmem:[%s220 + $0x20] sm:$0xf]
      %v238 = vld [vmem:[%s220 + $0x24] sm:$0xf]
      %v239 = vld [vmem:[%s220 + $0x28] sm:$0xf]
      %v240 = vld [vmem:[%s220 + $0x2c] sm:$0xf]
      %v241 = vld [vmem:[%s220 + $0x30] sm:$0xf]
      %v242 = vld [vmem:[%s220 + $0x34] sm:$0xf]
      %v243 = vld [vmem:[%s220 + $0x38] sm:$0xf]
      %v244 = vld [vmem:[%s220 + $0x3c] sm:$0xf]
      %v245 = vld [vmem:[%s220 + $0x40] sm:$0xf]
      %v246 = vld [vmem:[%s220 + $0x44] sm:$0xf]
      %v247 = vld [vmem:[%s220 + $0x48] sm:$0xf]
      %v248 = vld [vmem:[%s220 + $0x4c] sm:$0xf]
      %v249 = vld [vmem:[%s220 + $0x50] sm:$0xf]
      %v250 = vld [vmem:[%s220 + $0x54] sm:$0xf]
      %v251 = vld [vmem:[%s220 + $0x58] sm:$0xf]
      %v252 = vld [vmem:[%s220 + $0x5c] sm:$0xf]
      %v253 = vld [vmem:[%s220 + $0x60] sm:$0xf]
      %v254 = vld [vmem:[%s220 + $0x64] sm:$0xf]
      %v255 = vld [vmem:[%s220 + $0x68] sm:$0xf]
      %v256 = vld [vmem:[%s220 + $0x6c] sm:$0xf]
      %v257 = vld [vmem:[%s220 + $0x70] sm:$0xf]
      %v258 = vld [vmem:[%s220 + $0x74] sm:$0xf]
      %v259 = vld [vmem:[%s220 + $0x78] sm:$0xf]
      %v260 = vld [vmem:[%s220 + $0x7c] sm:$0xf]
      %v261 = vld [vmem:[%s220 + $0x80] sm:$0xf]
      %v262 = vld [vmem:[%s220 + $0x84] sm:$0xf]
      %v263 = vld [vmem:[%s220 + $0x88] sm:$0xf]
      %v264 = vld [vmem:[%s220 + $0x8c] sm:$0xf]
      %v265 = vld [vmem:[%s220 + $0x90] sm:$0xf]
      %v266 = vld [vmem:[%s220 + $0x94] sm:$0xf]
      %v267 = vld [vmem:[%s220 + $0x98] sm:$0xf]
      %v268 = vld [vmem:[%s220 + $0x9c] sm:$0xf]
      %v269 = vld [vmem:[%s220 + $0xa0] sm:$0xf]
      %v270 = vld [vmem:[%s220 + $0xa4] sm:$0xf]
      %v271 = vld [vmem:[%s220 + $0xa8] sm:$0xf]
      %v272 = vld [vmem:[%s220 + $0xac] sm:$0xf]
      %v273 = vld [vmem:[%s220 + $0xb0] sm:$0xf]
      %v274 = vld [vmem:[%s220 + $0xb4] sm:$0xf]
      %v275 = vld [vmem:[%s220 + $0xb8] sm:$0xf]
      %v276 = vld [vmem:[%s220 + $0xbc] sm:$0xf]
      %v277 = vld [vmem:[%s220 + $0xc0] sm:$0xf]
      %v278 = vld [vmem:[%s220 + $0xc4] sm:$0xf]
      %v279 = vld [vmem:[%s220 + $0xc8] sm:$0xf]
      %v280 = vld [vmem:[%s220 + $0xcc] sm:$0xf]
      %v281 = vld [vmem:[%s220 + $0xd0] sm:$0xf]
      %v282 = vld [vmem:[%s220 + $0xd4] sm:$0xf]
      %v283 = vld [vmem:[%s220 + $0xd8] sm:$0xf]
      %v284 = vld [vmem:[%s220 + $0xdc] sm:$0xf]
      %v285 = vld [vmem:[%s220 + $0xe0] sm:$0xf]
      %v286 = vld [vmem:[%s220 + $0xe4] sm:$0xf]
      %v287 = vld [vmem:[%s220 + $0xe8] sm:$0xf]
      %v288 = vld [vmem:[%s220 + $0xec] sm:$0xf]
      %v289 = vld [vmem:[%s220 + $0xf0] sm:$0xf]
      %v290 = vld [vmem:[%s220 + $0xf4] sm:$0xf]
      %v291 = vld [vmem:[%s220 + $0xf8] sm:$0xf]
      %v292 = vld [vmem:[%s220 + $0xfc] sm:$0xf]
      %v293 = vld [vmem:[%s1] sm:$0xf]
      %v294 = vld [vmem:[%s1 + $0x4] sm:$0xf]
      %v295 = vld [vmem:[%s1 + $0x8] sm:$0xf]
      %v296 = vld [vmem:[%s1 + $0xc] sm:$0xf]
      %v297 = vld [vmem:[%s1 + $0x10] sm:$0xf]
      %v298 = vld [vmem:[%s1 + $0x14] sm:$0xf]
      %v299 = vld [vmem:[%s1 + $0x18] sm:$0xf]
      %v300 = vld [vmem:[%s1 + $0x1c] sm:$0xf]
      %v301 = vld [vmem:[%s1 + $0x20] sm:$0xf]
      %v302 = vld [vmem:[%s1 + $0x24] sm:$0xf]
      %v303 = vld [vmem:[%s1 + $0x28] sm:$0xf]
      %v304 = vld [vmem:[%s1 + $0x2c] sm:$0xf]
      %v305 = vld [vmem:[%s1 + $0x30] sm:$0xf]
      %v306 = vld [vmem:[%s1 + $0x34] sm:$0xf]
      %v307 = vld [vmem:[%s1 + $0x38] sm:$0xf]
      %v308 = vld [vmem:[%s1 + $0x3c] sm:$0xf]
      %v309 = vld [vmem:[%s2] sm:$0x1]
      %v311 = vlaneseq
      %v312 = vshrl.u32 %v311, 7
      %v313 = vsub.s32 0, %v312
      %v314 = vrot.slane %v309, %v313
      %v380 = vunpack.c.l.b16 %v229
      %v381 = vunpack.c.l.b16 %v230
      %v382 = vunpack.c.l.b16 %v231
      %v383 = vunpack.c.l.b16 %v232
      %v384 = vunpack.c.l.b16 %v233
      %v385 = vunpack.c.l.b16 %v234
      %v386 = vunpack.c.l.b16 %v235
      %v387 = vunpack.c.l.b16 %v236
      %v388 = vunpack.c.l.b16 %v237
      %v389 = vunpack.c.l.b16 %v238
      %v390 = vunpack.c.l.b16 %v239
      %v391 = vunpack.c.l.b16 %v240
      %v392 = vunpack.c.l.b16 %v241
      %v393 = vunpack.c.l.b16 %v242
      %v394 = vunpack.c.l.b16 %v243
      %v395 = vunpack.c.l.b16 %v244
      %v396 = vunpack.c.l.b16 %v245
      %v397 = vunpack.c.l.b16 %v246
      %v398 = vunpack.c.l.b16 %v247
      %v399 = vunpack.c.l.b16 %v248
      %v400 = vunpack.c.l.b16 %v249
      %v401 = vunpack.c.l.b16 %v250
      %v402 = vunpack.c.l.b16 %v251
      %v403 = vunpack.c.l.b16 %v252
      %v404 = vunpack.c.l.b16 %v253
      %v405 = vunpack.c.l.b16 %v254
      %v406 = vunpack.c.l.b16 %v255
      %v407 = vunpack.c.l.b16 %v256
      %v408 = vunpack.c.l.b16 %v257
      %v409 = vunpack.c.l.b16 %v258
      %v410 = vunpack.c.l.b16 %v259
      %v411 = vunpack.c.l.b16 %v260
      %v412 = vunpack.c.l.b16 %v261
      %v413 = vunpack.c.l.b16 %v262
      %v414 = vunpack.c.l.b16 %v263
      %v415 = vunpack.c.l.b16 %v264
      %v416 = vunpack.c.l.b16 %v265
      %v417 = vunpack.c.l.b16 %v266
      %v418 = vunpack.c.l.b16 %v267
      %v419 = vunpack.c.l.b16 %v268
      %v420 = vunpack.c.l.b16 %v269
      %v421 = vunpack.c.l.b16 %v270
      %v422 = vunpack.c.l.b16 %v271
      %v423 = vunpack.c.l.b16 %v272
      %v424 = vunpack.c.l.b16 %v273
      %v425 = vunpack.c.l.b16 %v274
      %v426 = vunpack.c.l.b16 %v275
      %v427 = vunpack.c.l.b16 %v276
      %v428 = vunpack.c.l.b16 %v277
      %v429 = vunpack.c.l.b16 %v278
      %v430 = vunpack.c.l.b16 %v279
      %v431 = vunpack.c.l.b16 %v280
      %v432 = vunpack.c.l.b16 %v281
      %v433 = vunpack.c.l.b16 %v282
      %v434 = vunpack.c.l.b16 %v283
      %v435 = vunpack.c.l.b16 %v284
      %v436 = vunpack.c.l.b16 %v285
      %v437 = vunpack.c.l.b16 %v286
      %v438 = vunpack.c.l.b16 %v287
      %v439 = vunpack.c.l.b16 %v288
      %v440 = vunpack.c.l.b16 %v289
      %v441 = vunpack.c.l.b16 %v290
      %v442 = vunpack.c.l.b16 %v291
      %v443 = vunpack.c.l.b16 %v292
      %v444 = vpack.c.b16 %v381, %v380
      %v445 = vpack.c.b16 %v383, %v382
      %v446 = vpack.c.b16 %v385, %v384
      %v447 = vpack.c.b16 %v387, %v386
      %v448 = vpack.c.b16 %v389, %v388
      %v449 = vpack.c.b16 %v391, %v390
      %v450 = vpack.c.b16 %v393, %v392
      %v451 = vpack.c.b16 %v395, %v394
      %v452 = vpack.c.b16 %v397, %v396
      %v453 = vpack.c.b16 %v399, %v398
      %v454 = vpack.c.b16 %v401, %v400
      %v455 = vpack.c.b16 %v403, %v402
      %v456 = vpack.c.b16 %v405, %v404
      %v457 = vpack.c.b16 %v407, %v406
      %v458 = vpack.c.b16 %v409, %v408
      %v459 = vpack.c.b16 %v411, %v410
      %v460 = vpack.c.b16 %v413, %v412
      %v461 = vpack.c.b16 %v415, %v414
      %v462 = vpack.c.b16 %v417, %v416
      %v463 = vpack.c.b16 %v419, %v418
      %v464 = vpack.c.b16 %v421, %v420
      %v465 = vpack.c.b16 %v423, %v422
      %v466 = vpack.c.b16 %v425, %v424
      %v467 = vpack.c.b16 %v427, %v426
      %v468 = vpack.c.b16 %v429, %v428
      %v469 = vpack.c.b16 %v431, %v430
      %v470 = vpack.c.b16 %v433, %v432
      %v471 = vpack.c.b16 %v435, %v434
      %v472 = vpack.c.b16 %v437, %v436
      %v473 = vpack.c.b16 %v439, %v438
      %v474 = vpack.c.b16 %v441, %v440
      %v475 = vpack.c.b16 %v443, %v442
      %v524 = vunpack.c.l.b16 %v293
      %v525 = vunpack.c.l.b16 %v294
      %v526 = vunpack.c.l.b16 %v295
      %v527 = vunpack.c.l.b16 %v296
      %v528 = vunpack.c.l.b16 %v297
      %v529 = vunpack.c.l.b16 %v298
      %v530 = vunpack.c.l.b16 %v299
      %v531 = vunpack.c.l.b16 %v300
      %v532 = vunpack.c.l.b16 %v301
      %v533 = vunpack.c.l.b16 %v302
      %v534 = vunpack.c.l.b16 %v303
      %v535 = vunpack.c.l.b16 %v304
      %v536 = vunpack.c.l.b16 %v305
      %v537 = vunpack.c.l.b16 %v306
      %v538 = vunpack.c.l.b16 %v307
      %v539 = vunpack.c.l.b16 %v308
      %v540 = vpack.c.b16 %v525, %v524
      %v541 = vpack.c.b16 %v527, %v526
      %v542 = vpack.c.b16 %v529, %v528
      %v543 = vpack.c.b16 %v531, %v530
      %v544 = vpack.c.b16 %v533, %v532
      %v545 = vpack.c.b16 %v535, %v534
      %v546 = vpack.c.b16 %v537, %v536
      %v547 = vpack.c.b16 %v539, %v538
      %556 = vmatprep.subr.bf16.mxu0 0
      %557 = vmatpush1.bf16.msra.mxu0 %v547
      %558 = vmatprep.subr.bf16.mxu0 0
      %559 = vmatpush1.bf16.msra.mxu0 %v546
      %560 = vmatprep.subr.bf16.mxu0 0
      %561 = vmatpush1.bf16.msra.mxu0 %v545
      %562 = vmatprep.subr.bf16.mxu0 0
      %563 = vmatpush1.bf16.msra.mxu0 %v544
      %564 = vmatprep.subr.bf16.mxu0 0
      %565 = vmatpush1.bf16.msra.mxu0 %v543
      %566 = vmatprep.subr.bf16.mxu0 0
      %567 = vmatpush1.bf16.msra.mxu0 %v542
      %568 = vmatprep.subr.bf16.mxu0 0
      %569 = vmatpush1.bf16.msra.mxu0 %v541
      %570 = vmatprep.subr.bf16.mxu0 0
      %571 = vmatpush1.bf16.msra.mxu0 %v540
      %572 = vmatprep.subr.bf16.mxu0 0
      %573 = vmatpush2.bf16.msra.mxu0 0
      %574 = vmatprep.subr.bf16.mxu0 0
      %575 = vmatpush2.bf16.msra.mxu0 0
      %576 = vmatprep.subr.bf16.mxu0 0
      %577 = vmatpush2.bf16.msra.mxu0 0
      %578 = vmatprep.subr.bf16.mxu0 0
      %579 = vmatpush2.bf16.msra.mxu0 0
      %580 = vmatprep.subr.bf16.mxu0 0
      %581 = vmatpush2.bf16.msra.mxu0 0
      %582 = vmatprep.subr.bf16.mxu0 0
      %583 = vmatpush2.bf16.msra.mxu0 0
      %584 = vmatprep.subr.bf16.mxu0 0
      %585 = vmatpush2.bf16.msra.mxu0 0
      %586 = vmatprep.subr.bf16.mxu0 0
      %587 = vmatpush2.bf16.msra.mxu0 0
      %588 = vmatprep.mubr.bf16.mxu0 0
      %589 = vmatmul.mubr.bf16.gmra.mxu0 %v444
      %v590 = vpop.f32.mrf.mxu0
      %v591 = vadd.f32 %v314, %v590
      %v592 = vpop.f32.mrf.mxu0
      %v593 = vpop.f32.mrf.mxu0
      %v594 = vadd.f32 %v314, %v593
      %v595 = vpop.f32.mrf.mxu0
      %596 = vmatprep.mubr.bf16.mxu0 0
      %597 = vmatmul.mubr.bf16.gmra.mxu0 %v445
      %v598 = vpop.f32.mrf.mxu0
      %v599 = vadd.f32 %v314, %v598
      %v600 = vpop.f32.mrf.mxu0
      %v601 = vpop.f32.mrf.mxu0
      %v602 = vadd.f32 %v314, %v601
      %v603 = vpop.f32.mrf.mxu0
      %604 = vmatprep.mubr.bf16.mxu0 0
      %605 = vmatmul.mubr.bf16.gmra.mxu0 %v446
      %v606 = vpop.f32.mrf.mxu0
      %v607 = vadd.f32 %v314, %v606
      %v608 = vpop.f32.mrf.mxu0
      %v609 = vpop.f32.mrf.mxu0
      %v610 = vadd.f32 %v314, %v609
      %v611 = vpop.f32.mrf.mxu0
      %612 = vmatprep.mubr.bf16.mxu0 0
      %613 = vmatmul.mubr.bf16.gmra.mxu0 %v447
      %v614 = vpop.f32.mrf.mxu0
      %v615 = vadd.f32 %v314, %v614
      %v616 = vpop.f32.mrf.mxu0
      %v617 = vpop.f32.mrf.mxu0
      %v618 = vadd.f32 %v314, %v617
      %v619 = vpop.f32.mrf.mxu0
      %620 = vmatprep.mubr.bf16.mxu0 0
      %621 = vmatmul.mubr.bf16.gmra.mxu0 %v448
      %v622 = vpop.f32.mrf.mxu0
      %v623 = vadd.f32 %v314, %v622
      %v624 = vpop.f32.mrf.mxu0
      %v625 = vpop.f32.mrf.mxu0
      %v626 = vadd.f32 %v314, %v625
      %v627 = vpop.f32.mrf.mxu0
      %628 = vmatprep.mubr.bf16.mxu0 0
      %629 = vmatmul.mubr.bf16.gmra.mxu0 %v449
      %v630 = vpop.f32.mrf.mxu0
      %v631 = vadd.f32 %v314, %v630
      %v632 = vpop.f32.mrf.mxu0
      %v633 = vpop.f32.mrf.mxu0
      %v634 = vadd.f32 %v314, %v633
      %v635 = vpop.f32.mrf.mxu0
      %636 = vmatprep.mubr.bf16.mxu0 0
      %637 = vmatmul.mubr.bf16.gmra.mxu0 %v450
      %v638 = vpop.f32.mrf.mxu0
      %v639 = vadd.f32 %v314, %v638
      %v640 = vpop.f32.mrf.mxu0
      %v641 = vpop.f32.mrf.mxu0
      %v642 = vadd.f32 %v314, %v641
      %v643 = vpop.f32.mrf.mxu0
      %644 = vmatprep.mubr.bf16.mxu0 0
      %645 = vmatmul.mubr.bf16.gmra.mxu0 %v451
      %v646 = vpop.f32.mrf.mxu0
      %v647 = vadd.f32 %v314, %v646
      %v648 = vpop.f32.mrf.mxu0
      %v649 = vpop.f32.mrf.mxu0
      %v650 = vadd.f32 %v314, %v649
      %v651 = vpop.f32.mrf.mxu0
      %652 = vmatprep.mubr.bf16.mxu0 0
      %653 = vmatmul.mubr.bf16.gmra.mxu0 %v452
      %v654 = vpop.f32.mrf.mxu0
      %v655 = vadd.f32 %v314, %v654
      %v656 = vpop.f32.mrf.mxu0
      %v657 = vpop.f32.mrf.mxu0
      %v658 = vadd.f32 %v314, %v657
      %v659 = vpop.f32.mrf.mxu0
      %660 = vmatprep.mubr.bf16.mxu0 0
      %661 = vmatmul.mubr.bf16.gmra.mxu0 %v453
      %v662 = vpop.f32.mrf.mxu0
      %v663 = vadd.f32 %v314, %v662
      %v664 = vpop.f32.mrf.mxu0
      %v665 = vpop.f32.mrf.mxu0
      %v666 = vadd.f32 %v314, %v665
      %v667 = vpop.f32.mrf.mxu0
      %668 = vmatprep.mubr.bf16.mxu0 0
      %669 = vmatmul.mubr.bf16.gmra.mxu0 %v454
      %v670 = vpop.f32.mrf.mxu0
      %v671 = vadd.f32 %v314, %v670
      %v672 = vpop.f32.mrf.mxu0
      %v673 = vpop.f32.mrf.mxu0
      %v674 = vadd.f32 %v314, %v673
      %v675 = vpop.f32.mrf.mxu0
      %676 = vmatprep.mubr.bf16.mxu0 0
      %677 = vmatmul.mubr.bf16.gmra.mxu0 %v455
      %v678 = vpop.f32.mrf.mxu0
      %v679 = vadd.f32 %v314, %v678
      %v680 = vpop.f32.mrf.mxu0
      %v681 = vpop.f32.mrf.mxu0
      %v682 = vadd.f32 %v314, %v681
      %v683 = vpop.f32.mrf.mxu0
      %684 = vmatprep.mubr.bf16.mxu0 0
      %685 = vmatmul.mubr.bf16.gmra.mxu0 %v456
      %v686 = vpop.f32.mrf.mxu0
      %v687 = vadd.f32 %v314, %v686
      %v688 = vpop.f32.mrf.mxu0
      %v689 = vpop.f32.mrf.mxu0
      %v690 = vadd.f32 %v314, %v689
      %v691 = vpop.f32.mrf.mxu0
      %692 = vmatprep.mubr.bf16.mxu0 0
      %693 = vmatmul.mubr.bf16.gmra.mxu0 %v457
      %v694 = vpop.f32.mrf.mxu0
      %v695 = vadd.f32 %v314, %v694
      %v696 = vpop.f32.mrf.mxu0
      %v697 = vpop.f32.mrf.mxu0
      %v698 = vadd.f32 %v314, %v697
      %v699 = vpop.f32.mrf.mxu0
      %700 = vmatprep.mubr.bf16.mxu0 0
      %701 = vmatmul.mubr.bf16.gmra.mxu0 %v458
      %v702 = vpop.f32.mrf.mxu0
      %v703 = vadd.f32 %v314, %v702
      %v704 = vpop.f32.mrf.mxu0
      %v705 = vpop.f32.mrf.mxu0
      %v706 = vadd.f32 %v314, %v705
      %v707 = vpop.f32.mrf.mxu0
      %708 = vmatprep.mubr.bf16.mxu0 0
      %709 = vmatmul.mubr.bf16.gmra.mxu0 %v459
      %v710 = vpop.f32.mrf.mxu0
      %v711 = vadd.f32 %v314, %v710
      %v712 = vpop.f32.mrf.mxu0
      %v713 = vpop.f32.mrf.mxu0
      %v714 = vadd.f32 %v314, %v713
      %v715 = vpop.f32.mrf.mxu0
      %716 = vmatprep.mubr.bf16.mxu0 0
      %717 = vmatmul.mubr.bf16.gmra.mxu0 %v460
      %v718 = vpop.f32.mrf.mxu0
      %v719 = vadd.f32 %v314, %v718
      %v720 = vpop.f32.mrf.mxu0
      %v721 = vpop.f32.mrf.mxu0
      %v722 = vadd.f32 %v314, %v721
      %v723 = vpop.f32.mrf.mxu0
      %724 = vmatprep.mubr.bf16.mxu0 0
      %725 = vmatmul.mubr.bf16.gmra.mxu0 %v461
      %v726 = vpop.f32.mrf.mxu0
      %v727 = vadd.f32 %v314, %v726
      %v728 = vpop.f32.mrf.mxu0
      %v729 = vpop.f32.mrf.mxu0
      %v730 = vadd.f32 %v314, %v729
      %v731 = vpop.f32.mrf.mxu0
      %732 = vmatprep.mubr.bf16.mxu0 0
      %733 = vmatmul.mubr.bf16.gmra.mxu0 %v462
      %v734 = vpop.f32.mrf.mxu0
      %v735 = vadd.f32 %v314, %v734
      %v736 = vpop.f32.mrf.mxu0
      %v737 = vpop.f32.mrf.mxu0
      %v738 = vadd.f32 %v314, %v737
      %v739 = vpop.f32.mrf.mxu0
      %740 = vmatprep.mubr.bf16.mxu0 0
      %741 = vmatmul.mubr.bf16.gmra.mxu0 %v463
      %v742 = vpop.f32.mrf.mxu0
      %v743 = vadd.f32 %v314, %v742
      %v744 = vpop.f32.mrf.mxu0
      %v745 = vpop.f32.mrf.mxu0
      %v746 = vadd.f32 %v314, %v745
      %v747 = vpop.f32.mrf.mxu0
      %748 = vmatprep.mubr.bf16.mxu0 0
      %749 = vmatmul.mubr.bf16.gmra.mxu0 %v464
      %v750 = vpop.f32.mrf.mxu0
      %v751 = vadd.f32 %v314, %v750
      %v752 = vpop.f32.mrf.mxu0
      %v753 = vpop.f32.mrf.mxu0
      %v754 = vadd.f32 %v314, %v753
      %v755 = vpop.f32.mrf.mxu0
      %756 = vmatprep.mubr.bf16.mxu0 0
      %757 = vmatmul.mubr.bf16.gmra.mxu0 %v465
      %v758 = vpop.f32.mrf.mxu0
      %v759 = vadd.f32 %v314, %v758
      %v760 = vpop.f32.mrf.mxu0
      %v761 = vpop.f32.mrf.mxu0
      %v762 = vadd.f32 %v314, %v761
      %v763 = vpop.f32.mrf.mxu0
      %764 = vmatprep.mubr.bf16.mxu0 0
      %765 = vmatmul.mubr.bf16.gmra.mxu0 %v466
      %v766 = vpop.f32.mrf.mxu0
      %v767 = vadd.f32 %v314, %v766
      %v768 = vpop.f32.mrf.mxu0
      %v769 = vpop.f32.mrf.mxu0
      %v770 = vadd.f32 %v314, %v769
      %v771 = vpop.f32.mrf.mxu0
      %772 = vmatprep.mubr.bf16.mxu0 0
      %773 = vmatmul.mubr.bf16.gmra.mxu0 %v467
      %v774 = vpop.f32.mrf.mxu0
      %v775 = vadd.f32 %v314, %v774
      %v776 = vpop.f32.mrf.mxu0
      %v777 = vpop.f32.mrf.mxu0
      %v778 = vadd.f32 %v314, %v777
      %v779 = vpop.f32.mrf.mxu0
      %780 = vmatprep.mubr.bf16.mxu0 0
      %781 = vmatmul.mubr.bf16.gmra.mxu0 %v468
      %v782 = vpop.f32.mrf.mxu0
      %v783 = vadd.f32 %v314, %v782
      %v784 = vpop.f32.mrf.mxu0
      %v785 = vpop.f32.mrf.mxu0
      %v786 = vadd.f32 %v314, %v785
      %v787 = vpop.f32.mrf.mxu0
      %788 = vmatprep.mubr.bf16.mxu0 0
      %789 = vmatmul.mubr.bf16.gmra.mxu0 %v469
      %v790 = vpop.f32.mrf.mxu0
      %v791 = vadd.f32 %v314, %v790
      %v792 = vpop.f32.mrf.mxu0
      %v793 = vpop.f32.mrf.mxu0
      %v794 = vadd.f32 %v314, %v793
      %v795 = vpop.f32.mrf.mxu0
      %796 = vmatprep.mubr.bf16.mxu0 0
      %797 = vmatmul.mubr.bf16.gmra.mxu0 %v470
      %v798 = vpop.f32.mrf.mxu0
      %v799 = vadd.f32 %v314, %v798
      %v800 = vpop.f32.mrf.mxu0
      %v801 = vpop.f32.mrf.mxu0
      %v802 = vadd.f32 %v314, %v801
      %v803 = vpop.f32.mrf.mxu0
      %804 = vmatprep.mubr.bf16.mxu0 0
      %805 = vmatmul.mubr.bf16.gmra.mxu0 %v471
      %v806 = vpop.f32.mrf.mxu0
      %v807 = vadd.f32 %v314, %v806
      %v808 = vpop.f32.mrf.mxu0
      %v809 = vpop.f32.mrf.mxu0
      %v810 = vadd.f32 %v314, %v809
      %v811 = vpop.f32.mrf.mxu0
      %812 = vmatprep.mubr.bf16.mxu0 0
      %813 = vmatmul.mubr.bf16.gmra.mxu0 %v472
      %v814 = vpop.f32.mrf.mxu0
      %v815 = vadd.f32 %v314, %v814
      %v816 = vpop.f32.mrf.mxu0
      %v817 = vpop.f32.mrf.mxu0
      %v818 = vadd.f32 %v314, %v817
      %v819 = vpop.f32.mrf.mxu0
      %820 = vmatprep.mubr.bf16.mxu0 0
      %821 = vmatmul.mubr.bf16.gmra.mxu0 %v473
      %v822 = vpop.f32.mrf.mxu0
      %v823 = vadd.f32 %v314, %v822
      %v824 = vpop.f32.mrf.mxu0
      %v825 = vpop.f32.mrf.mxu0
      %v826 = vadd.f32 %v314, %v825
      %v827 = vpop.f32.mrf.mxu0
      %828 = vmatprep.mubr.bf16.mxu0 0
      %829 = vmatmul.mubr.bf16.gmra.mxu0 %v474
      %v830 = vpop.f32.mrf.mxu0
      %v831 = vadd.f32 %v314, %v830
      %v832 = vpop.f32.mrf.mxu0
      %v833 = vpop.f32.mrf.mxu0
      %v834 = vadd.f32 %v314, %v833
      %v835 = vpop.f32.mrf.mxu0
      %836 = vmatprep.mubr.bf16.mxu0 0
      %837 = vmatmul.mubr.bf16.gmra.mxu0 %v475
      %v838 = vpop.f32.mrf.mxu0
      %v839 = vadd.f32 %v314, %v838
      %v840 = vpop.f32.mrf.mxu0
      %v841 = vpop.f32.mrf.mxu0
      %v842 = vadd.f32 %v314, %v841
      %v843 = vpop.f32.mrf.mxu0
      %844 = vdwg.mxu0
      %vm845 = vcmask 261120
      %v846 = vsel %vm845, %v591, 0.0
      %847 = vadd.xlane.f32.xlu0 %v846
      %v848 = vpop.xlane.xlu0 %847
      %v849 = vsel %vm845, %v594, 0.0
      %850 = vadd.xlane.f32.xlu0 %v849
      %v851 = vpop.xlane.xlu0 %850
      %v852 = vsel %vm845, %v599, 0.0
      %853 = vadd.xlane.f32.xlu0 %v852
      %v854 = vpop.xlane.xlu0 %853
      %v855 = vsel %vm845, %v602, 0.0
      %856 = vadd.xlane.f32.xlu0 %v855
      %v857 = vpop.xlane.xlu0 %856
      %v858 = vsel %vm845, %v607, 0.0
      %859 = vadd.xlane.f32.xlu0 %v858
      %v860 = vpop.xlane.xlu0 %859
      %v861 = vsel %vm845, %v610, 0.0
      %862 = vadd.xlane.f32.xlu0 %v861
      %v863 = vpop.xlane.xlu0 %862
      %v864 = vsel %vm845, %v615, 0.0
      %865 = vadd.xlane.f32.xlu0 %v864
      %v866 = vpop.xlane.xlu0 %865
      %v867 = vsel %vm845, %v618, 0.0
      %868 = vadd.xlane.f32.xlu0 %v867
      %v869 = vpop.xlane.xlu0 %868
      %v870 = vsel %vm845, %v623, 0.0
      %871 = vadd.xlane.f32.xlu0 %v870
      %v872 = vpop.xlane.xlu0 %871
      %v873 = vsel %vm845, %v626, 0.0
      %874 = vadd.xlane.f32.xlu0 %v873
      %v875 = vpop.xlane.xlu0 %874
      %v876 = vsel %vm845, %v631, 0.0
      %877 = vadd.xlane.f32.xlu0 %v876
      %v878 = vpop.xlane.xlu0 %877
      %v879 = vsel %vm845, %v634, 0.0
      %880 = vadd.xlane.f32.xlu0 %v879
      %v881 = vpop.xlane.xlu0 %880
      %v882 = vsel %vm845, %v639, 0.0
      %883 = vadd.xlane.f32.xlu0 %v882
      %v884 = vpop.xlane.xlu0 %883
      %v885 = vsel %vm845, %v642, 0.0
      %886 = vadd.xlane.f32.xlu0 %v885
      %v887 = vpop.xlane.xlu0 %886
      %v888 = vsel %vm845, %v647, 0.0
      %889 = vadd.xlane.f32.xlu0 %v888
      %v890 = vpop.xlane.xlu0 %889
      %v891 = vsel %vm845, %v650, 0.0
      %892 = vadd.xlane.f32.xlu0 %v891
      %v893 = vpop.xlane.xlu0 %892
      %v894 = vsel %vm845, %v655, 0.0
      %895 = vadd.xlane.f32.xlu0 %v894
      %v896 = vpop.xlane.xlu0 %895
      %v897 = vsel %vm845, %v658, 0.0
      %898 = vadd.xlane.f32.xlu0 %v897
      %v899 = vpop.xlane.xlu0 %898
      %v900 = vsel %vm845, %v663, 0.0
      %901 = vadd.xlane.f32.xlu0 %v900
      %v902 = vpop.xlane.xlu0 %901
      %v903 = vsel %vm845, %v666, 0.0
      %904 = vadd.xlane.f32.xlu0 %v903
      %v905 = vpop.xlane.xlu0 %904
      %v906 = vsel %vm845, %v671, 0.0
      %907 = vadd.xlane.f32.xlu0 %v906
      %v908 = vpop.xlane.xlu0 %907
      %v909 = vsel %vm845, %v674, 0.0
      %910 = vadd.xlane.f32.xlu0 %v909
      %v911 = vpop.xlane.xlu0 %910
      %v912 = vsel %vm845, %v679, 0.0
      %913 = vadd.xlane.f32.xlu0 %v912
      %v914 = vpop.xlane.xlu0 %913
      %v915 = vsel %vm845, %v682, 0.0
      %916 = vadd.xlane.f32.xlu0 %v915
      %v917 = vpop.xlane.xlu0 %916
      %v918 = vsel %vm845, %v687, 0.0
      %919 = vadd.xlane.f32.xlu0 %v918
      %v920 = vpop.xlane.xlu0 %919
      %v921 = vsel %vm845, %v690, 0.0
      %922 = vadd.xlane.f32.xlu0 %v921
      %v923 = vpop.xlane.xlu0 %922
      %v924 = vsel %vm845, %v695, 0.0
      %925 = vadd.xlane.f32.xlu0 %v924
      %v926 = vpop.xlane.xlu0 %925
      %v927 = vsel %vm845, %v698, 0.0
      %928 = vadd.xlane.f32.xlu0 %v927
      %v929 = vpop.xlane.xlu0 %928
      %v930 = vsel %vm845, %v703, 0.0
      %931 = vadd.xlane.f32.xlu0 %v930
      %v932 = vpop.xlane.xlu0 %931
      %v933 = vsel %vm845, %v706, 0.0
      %934 = vadd.xlane.f32.xlu0 %v933
      %v935 = vpop.xlane.xlu0 %934
      %v936 = vsel %vm845, %v711, 0.0
      %937 = vadd.xlane.f32.xlu0 %v936
      %v938 = vpop.xlane.xlu0 %937
      %v939 = vsel %vm845, %v714, 0.0
      %940 = vadd.xlane.f32.xlu0 %v939
      %v941 = vpop.xlane.xlu0 %940
      %v942 = vsel %vm845, %v719, 0.0
      %943 = vadd.xlane.f32.xlu0 %v942
      %v944 = vpop.xlane.xlu0 %943
      %v945 = vsel %vm845, %v722, 0.0
      %946 = vadd.xlane.f32.xlu0 %v945
      %v947 = vpop.xlane.xlu0 %946
      %v948 = vsel %vm845, %v727, 0.0
      %949 = vadd.xlane.f32.xlu0 %v948
      %v950 = vpop.xlane.xlu0 %949
      %v951 = vsel %vm845, %v730, 0.0
      %952 = vadd.xlane.f32.xlu0 %v951
      %v953 = vpop.xlane.xlu0 %952
      %v954 = vsel %vm845, %v735, 0.0
      %955 = vadd.xlane.f32.xlu0 %v954
      %v956 = vpop.xlane.xlu0 %955
      %v957 = vsel %vm845, %v738, 0.0
      %958 = vadd.xlane.f32.xlu0 %v957
      %v959 = vpop.xlane.xlu0 %958
      %v960 = vsel %vm845, %v743, 0.0
      %961 = vadd.xlane.f32.xlu0 %v960
      %v962 = vpop.xlane.xlu0 %961
      %v963 = vsel %vm845, %v746, 0.0
      %964 = vadd.xlane.f32.xlu0 %v963
      %v965 = vpop.xlane.xlu0 %964
      %v966 = vsel %vm845, %v751, 0.0
      %967 = vadd.xlane.f32.xlu0 %v966
      %v968 = vpop.xlane.xlu0 %967
      %v969 = vsel %vm845, %v754, 0.0
      %970 = vadd.xlane.f32.xlu0 %v969
      %v971 = vpop.xlane.xlu0 %970
      %v972 = vsel %vm845, %v759, 0.0
      %973 = vadd.xlane.f32.xlu0 %v972
      %v974 = vpop.xlane.xlu0 %973
      %v975 = vsel %vm845, %v762, 0.0
      %976 = vadd.xlane.f32.xlu0 %v975
      %v977 = vpop.xlane.xlu0 %976
      %v978 = vsel %vm845, %v767, 0.0
      %979 = vadd.xlane.f32.xlu0 %v978
      %v980 = vpop.xlane.xlu0 %979
      %v981 = vsel %vm845, %v770, 0.0
      %982 = vadd.xlane.f32.xlu0 %v981
      %v983 = vpop.xlane.xlu0 %982
      %v984 = vsel %vm845, %v775, 0.0
      %985 = vadd.xlane.f32.xlu0 %v984
      %v986 = vpop.xlane.xlu0 %985
      %v987 = vsel %vm845, %v778, 0.0
      %988 = vadd.xlane.f32.xlu0 %v987
      %v989 = vpop.xlane.xlu0 %988
      %v990 = vsel %vm845, %v783, 0.0
      %991 = vadd.xlane.f32.xlu0 %v990
      %v992 = vpop.xlane.xlu0 %991
      %v993 = vsel %vm845, %v786, 0.0
      %994 = vadd.xlane.f32.xlu0 %v993
      %v995 = vpop.xlane.xlu0 %994
      %v996 = vsel %vm845, %v791, 0.0
      %997 = vadd.xlane.f32.xlu0 %v996
      %v998 = vpop.xlane.xlu0 %997
      %v999 = vsel %vm845, %v794, 0.0
      %1000 = vadd.xlane.f32.xlu0 %v999
      %v1001 = vpop.xlane.xlu0 %1000
      %v1002 = vsel %vm845, %v799, 0.0
      %1003 = vadd.xlane.f32.xlu0 %v1002
      %v1004 = vpop.xlane.xlu0 %1003
      %v1005 = vsel %vm845, %v802, 0.0
      %1006 = vadd.xlane.f32.xlu0 %v1005
      %v1007 = vpop.xlane.xlu0 %1006
      %v1008 = vsel %vm845, %v807, 0.0
      %1009 = vadd.xlane.f32.xlu0 %v1008
      %v1010 = vpop.xlane.xlu0 %1009
      %v1011 = vsel %vm845, %v810, 0.0
      %1012 = vadd.xlane.f32.xlu0 %v1011
      %v1013 = vpop.xlane.xlu0 %1012
      %v1014 = vsel %vm845, %v815, 0.0
      %1015 = vadd.xlane.f32.xlu0 %v1014
      %v1016 = vpop.xlane.xlu0 %1015
      %v1017 = vsel %vm845, %v818, 0.0
      %1018 = vadd.xlane.f32.xlu0 %v1017
      %v1019 = vpop.xlane.xlu0 %1018
      %v1020 = vsel %vm845, %v823, 0.0
      %1021 = vadd.xlane.f32.xlu0 %v1020
      %v1022 = vpop.xlane.xlu0 %1021
      %v1023 = vsel %vm845, %v826, 0.0
      %1024 = vadd.xlane.f32.xlu0 %v1023
      %v1025 = vpop.xlane.xlu0 %1024
      %v1026 = vsel %vm845, %v831, 0.0
      %1027 = vadd.xlane.f32.xlu0 %v1026
      %v1028 = vpop.xlane.xlu0 %1027
      %v1029 = vsel %vm845, %v834, 0.0
      %1030 = vadd.xlane.f32.xlu0 %v1029
      %v1031 = vpop.xlane.xlu0 %1030
      %v1032 = vsel %vm845, %v839, 0.0
      %1033 = vadd.xlane.f32.xlu0 %v1032
      %v1034 = vpop.xlane.xlu0 %1033
      %v1035 = vsel %vm845, %v842, 0.0
      %1036 = vadd.xlane.f32.xlu0 %v1035
      %v1037 = vpop.xlane.xlu0 %1036
      %v1038 = vrcp.pop 32.0
      %v1039 = vmul.f32 %v848, %v1038
      %v1040 = vmul.f32 %v851, %v1038
      %v1041 = vmul.f32 %v854, %v1038
      %v1042 = vmul.f32 %v857, %v1038
      %v1043 = vmul.f32 %v860, %v1038
      %v1044 = vmul.f32 %v863, %v1038
      %v1045 = vmul.f32 %v866, %v1038
      %v1046 = vmul.f32 %v869, %v1038
      %v1047 = vmul.f32 %v872, %v1038
      %v1048 = vmul.f32 %v875, %v1038
      %v1049 = vmul.f32 %v878, %v1038
      %v1050 = vmul.f32 %v881, %v1038
      %v1051 = vmul.f32 %v884, %v1038
      %v1052 = vmul.f32 %v887, %v1038
      %v1053 = vmul.f32 %v890, %v1038
      %v1054 = vmul.f32 %v893, %v1038
      %v1055 = vmul.f32 %v896, %v1038
      %v1056 = vmul.f32 %v899, %v1038
      %v1057 = vmul.f32 %v902, %v1038
      %v1058 = vmul.f32 %v905, %v1038
      %v1059 = vmul.f32 %v908, %v1038
      %v1060 = vmul.f32 %v911, %v1038
      %v1061 = vmul.f32 %v914, %v1038
      %v1062 = vmul.f32 %v917, %v1038
      %v1063 = vmul.f32 %v920, %v1038
      %v1064 = vmul.f32 %v923, %v1038
      %v1065 = vmul.f32 %v926, %v1038
      %v1066 = vmul.f32 %v929, %v1038
      %v1067 = vmul.f32 %v932, %v1038
      %v1068 = vmul.f32 %v935, %v1038
      %v1069 = vmul.f32 %v938, %v1038
      %v1070 = vmul.f32 %v941, %v1038
      %v1071 = vmul.f32 %v944, %v1038
      %v1072 = vmul.f32 %v947, %v1038
      %v1073 = vmul.f32 %v950, %v1038
      %v1074 = vmul.f32 %v953, %v1038
      %v1075 = vmul.f32 %v956, %v1038
      %v1076 = vmul.f32 %v959, %v1038
      %v1077 = vmul.f32 %v962, %v1038
      %v1078 = vmul.f32 %v965, %v1038
      %v1079 = vmul.f32 %v968, %v1038
      %v1080 = vmul.f32 %v971, %v1038
      %v1081 = vmul.f32 %v974, %v1038
      %v1082 = vmul.f32 %v977, %v1038
      %v1083 = vmul.f32 %v980, %v1038
      %v1084 = vmul.f32 %v983, %v1038
      %v1085 = vmul.f32 %v986, %v1038
      %v1086 = vmul.f32 %v989, %v1038
      %v1087 = vmul.f32 %v992, %v1038
      %v1088 = vmul.f32 %v995, %v1038
      %v1089 = vmul.f32 %v998, %v1038
      %v1090 = vmul.f32 %v1001, %v1038
      %v1091 = vmul.f32 %v1004, %v1038
      %v1092 = vmul.f32 %v1007, %v1038
      %v1093 = vmul.f32 %v1010, %v1038
      %v1094 = vmul.f32 %v1013, %v1038
      %v1095 = vmul.f32 %v1016, %v1038
      %v1096 = vmul.f32 %v1019, %v1038
      %v1097 = vmul.f32 %v1022, %v1038
      %v1098 = vmul.f32 %v1025, %v1038
      %v1099 = vmul.f32 %v1028, %v1038
      %v1100 = vmul.f32 %v1031, %v1038
      %v1101 = vmul.f32 %v1034, %v1038
      %v1102 = vmul.f32 %v1037, %v1038
      %v1103 = vsub.f32 %v591, %v1039
      %v1104 = vsub.f32 %v594, %v1040
      %v1105 = vsub.f32 %v599, %v1041
      %v1106 = vsub.f32 %v602, %v1042
      %v1107 = vsub.f32 %v607, %v1043
      %v1108 = vsub.f32 %v610, %v1044
      %v1109 = vsub.f32 %v615, %v1045
      %v1110 = vsub.f32 %v618, %v1046
      %v1111 = vsub.f32 %v623, %v1047
      %v1112 = vsub.f32 %v626, %v1048
      %v1113 = vsub.f32 %v631, %v1049
      %v1114 = vsub.f32 %v634, %v1050
      %v1115 = vsub.f32 %v639, %v1051
      %v1116 = vsub.f32 %v642, %v1052
      %v1117 = vsub.f32 %v647, %v1053
      %v1118 = vsub.f32 %v650, %v1054
      %v1119 = vsub.f32 %v655, %v1055
      %v1120 = vsub.f32 %v658, %v1056
      %v1121 = vsub.f32 %v663, %v1057
      %v1122 = vsub.f32 %v666, %v1058
      %v1123 = vsub.f32 %v671, %v1059
      %v1124 = vsub.f32 %v674, %v1060
      %v1125 = vsub.f32 %v679, %v1061
      %v1126 = vsub.f32 %v682, %v1062
      %v1127 = vsub.f32 %v687, %v1063
      %v1128 = vsub.f32 %v690, %v1064
      %v1129 = vsub.f32 %v695, %v1065
      %v1130 = vsub.f32 %v698, %v1066
      %v1131 = vsub.f32 %v703, %v1067
      %v1132 = vsub.f32 %v706, %v1068
      %v1133 = vsub.f32 %v711, %v1069
      %v1134 = vsub.f32 %v714, %v1070
      %v1135 = vsub.f32 %v719, %v1071
      %v1136 = vsub.f32 %v722, %v1072
      %v1137 = vsub.f32 %v727, %v1073
      %v1138 = vsub.f32 %v730, %v1074
      %v1139 = vsub.f32 %v735, %v1075
      %v1140 = vsub.f32 %v738, %v1076
      %v1141 = vsub.f32 %v743, %v1077
      %v1142 = vsub.f32 %v746, %v1078
      %v1143 = vsub.f32 %v751, %v1079
      %v1144 = vsub.f32 %v754, %v1080
      %v1145 = vsub.f32 %v759, %v1081
      %v1146 = vsub.f32 %v762, %v1082
      %v1147 = vsub.f32 %v767, %v1083
      %v1148 = vsub.f32 %v770, %v1084
      %v1149 = vsub.f32 %v775, %v1085
      %v1150 = vsub.f32 %v778, %v1086
      %v1151 = vsub.f32 %v783, %v1087
      %v1152 = vsub.f32 %v786, %v1088
      %v1153 = vsub.f32 %v791, %v1089
      %v1154 = vsub.f32 %v794, %v1090
      %v1155 = vsub.f32 %v799, %v1091
      %v1156 = vsub.f32 %v802, %v1092
      %v1157 = vsub.f32 %v807, %v1093
      %v1158 = vsub.f32 %v810, %v1094
      %v1159 = vsub.f32 %v815, %v1095
      %v1160 = vsub.f32 %v818, %v1096
      %v1161 = vsub.f32 %v823, %v1097
      %v1162 = vsub.f32 %v826, %v1098
      %v1163 = vsub.f32 %v831, %v1099
      %v1164 = vsub.f32 %v834, %v1100
      %v1165 = vsub.f32 %v839, %v1101
      %v1166 = vsub.f32 %v842, %v1102
      %v1167 = vmul.f32 %v1103, %v1103
      %v1168 = vmul.f32 %v1104, %v1104
      %v1169 = vmul.f32 %v1105, %v1105
      %v1170 = vmul.f32 %v1106, %v1106
      %v1171 = vmul.f32 %v1107, %v1107
      %v1172 = vmul.f32 %v1108, %v1108
      %v1173 = vmul.f32 %v1109, %v1109
      %v1174 = vmul.f32 %v1110, %v1110
      %v1175 = vmul.f32 %v1111, %v1111
      %v1176 = vmul.f32 %v1112, %v1112
      %v1177 = vmul.f32 %v1113, %v1113
      %v1178 = vmul.f32 %v1114, %v1114
      %v1179 = vmul.f32 %v1115, %v1115
      %v1180 = vmul.f32 %v1116, %v1116
      %v1181 = vmul.f32 %v1117, %v1117
      %v1182 = vmul.f32 %v1118, %v1118
      %v1183 = vmul.f32 %v1119, %v1119
      %v1184 = vmul.f32 %v1120, %v1120
      %v1185 = vmul.f32 %v1121, %v1121
      %v1186 = vmul.f32 %v1122, %v1122
      %v1187 = vmul.f32 %v1123, %v1123
      %v1188 = vmul.f32 %v1124, %v1124
      %v1189 = vmul.f32 %v1125, %v1125
      %v1190 = vmul.f32 %v1126, %v1126
      %v1191 = vmul.f32 %v1127, %v1127
      %v1192 = vmul.f32 %v1128, %v1128
      %v1193 = vmul.f32 %v1129, %v1129
      %v1194 = vmul.f32 %v1130, %v1130
      %v1195 = vmul.f32 %v1131, %v1131
      %v1196 = vmul.f32 %v1132, %v1132
      %v1197 = vmul.f32 %v1133, %v1133
      %v1198 = vmul.f32 %v1134, %v1134
      %v1199 = vmul.f32 %v1135, %v1135
      %v1200 = vmul.f32 %v1136, %v1136
      %v1201 = vmul.f32 %v1137, %v1137
      %v1202 = vmul.f32 %v1138, %v1138
      %v1203 = vmul.f32 %v1139, %v1139
      %v1204 = vmul.f32 %v1140, %v1140
      %v1205 = vmul.f32 %v1141, %v1141
      %v1206 = vmul.f32 %v1142, %v1142
      %v1207 = vmul.f32 %v1143, %v1143
      %v1208 = vmul.f32 %v1144, %v1144
      %v1209 = vmul.f32 %v1145, %v1145
      %v1210 = vmul.f32 %v1146, %v1146
      %v1211 = vmul.f32 %v1147, %v1147
      %v1212 = vmul.f32 %v1148, %v1148
      %v1213 = vmul.f32 %v1149, %v1149
      %v1214 = vmul.f32 %v1150, %v1150
      %v1215 = vmul.f32 %v1151, %v1151
      %v1216 = vmul.f32 %v1152, %v1152
      %v1217 = vmul.f32 %v1153, %v1153
      %v1218 = vmul.f32 %v1154, %v1154
      %v1219 = vmul.f32 %v1155, %v1155
      %v1220 = vmul.f32 %v1156, %v1156
      %v1221 = vmul.f32 %v1157, %v1157
      %v1222 = vmul.f32 %v1158, %v1158
      %v1223 = vmul.f32 %v1159, %v1159
      %v1224 = vmul.f32 %v1160, %v1160
      %v1225 = vmul.f32 %v1161, %v1161
      %v1226 = vmul.f32 %v1162, %v1162
      %v1227 = vmul.f32 %v1163, %v1163
      %v1228 = vmul.f32 %v1164, %v1164
      %v1229 = vmul.f32 %v1165, %v1165
      %v1230 = vmul.f32 %v1166, %v1166
      %v1231 = vsel %vm845, %v1167, 0.0
      %1232 = vadd.xlane.f32.xlu0 %v1231
      %v1233 = vpop.xlane.xlu0 %1232
      %v1234 = vsel %vm845, %v1168, 0.0
      %1235 = vadd.xlane.f32.xlu0 %v1234
      %v1236 = vpop.xlane.xlu0 %1235
      %v1237 = vsel %vm845, %v1169, 0.0
      %1238 = vadd.xlane.f32.xlu0 %v1237
      %v1239 = vpop.xlane.xlu0 %1238
      %v1240 = vsel %vm845, %v1170, 0.0
      %1241 = vadd.xlane.f32.xlu0 %v1240
      %v1242 = vpop.xlane.xlu0 %1241
      %v1243 = vsel %vm845, %v1171, 0.0
      %1244 = vadd.xlane.f32.xlu0 %v1243
      %v1245 = vpop.xlane.xlu0 %1244
      %v1246 = vsel %vm845, %v1172, 0.0
      %1247 = vadd.xlane.f32.xlu0 %v1246
      %v1248 = vpop.xlane.xlu0 %1247
      %v1249 = vsel %vm845, %v1173, 0.0
      %1250 = vadd.xlane.f32.xlu0 %v1249
      %v1251 = vpop.xlane.xlu0 %1250
      %v1252 = vsel %vm845, %v1174, 0.0
      %1253 = vadd.xlane.f32.xlu0 %v1252
      %v1254 = vpop.xlane.xlu0 %1253
      %v1255 = vsel %vm845, %v1175, 0.0
      %1256 = vadd.xlane.f32.xlu0 %v1255
      %v1257 = vpop.xlane.xlu0 %1256
      %v1258 = vsel %vm845, %v1176, 0.0
      %1259 = vadd.xlane.f32.xlu0 %v1258
      %v1260 = vpop.xlane.xlu0 %1259
      %v1261 = vsel %vm845, %v1177, 0.0
      %1262 = vadd.xlane.f32.xlu0 %v1261
      %v1263 = vpop.xlane.xlu0 %1262
      %v1264 = vsel %vm845, %v1178, 0.0
      %1265 = vadd.xlane.f32.xlu0 %v1264
      %v1266 = vpop.xlane.xlu0 %1265
      %v1267 = vsel %vm845, %v1179, 0.0
      %1268 = vadd.xlane.f32.xlu0 %v1267
      %v1269 = vpop.xlane.xlu0 %1268
      %v1270 = vsel %vm845, %v1180, 0.0
      %1271 = vadd.xlane.f32.xlu0 %v1270
      %v1272 = vpop.xlane.xlu0 %1271
      %v1273 = vsel %vm845, %v1181, 0.0
      %1274 = vadd.xlane.f32.xlu0 %v1273
      %v1275 = vpop.xlane.xlu0 %1274
      %v1276 = vsel %vm845, %v1182, 0.0
      %1277 = vadd.xlane.f32.xlu0 %v1276
      %v1278 = vpop.xlane.xlu0 %1277
      %v1279 = vsel %vm845, %v1183, 0.0
      %1280 = vadd.xlane.f32.xlu0 %v1279
      %v1281 = vpop.xlane.xlu0 %1280
      %v1282 = vsel %vm845, %v1184, 0.0
      %1283 = vadd.xlane.f32.xlu0 %v1282
      %v1284 = vpop.xlane.xlu0 %1283
      %v1285 = vsel %vm845, %v1185, 0.0
      %1286 = vadd.xlane.f32.xlu0 %v1285
      %v1287 = vpop.xlane.xlu0 %1286
      %v1288 = vsel %vm845, %v1186, 0.0
      %1289 = vadd.xlane.f32.xlu0 %v1288
      %v1290 = vpop.xlane.xlu0 %1289
      %v1291 = vsel %vm845, %v1187, 0.0
      %1292 = vadd.xlane.f32.xlu0 %v1291
      %v1293 = vpop.xlane.xlu0 %1292
      %v1294 = vsel %vm845, %v1188, 0.0
      %1295 = vadd.xlane.f32.xlu0 %v1294
      %v1296 = vpop.xlane.xlu0 %1295
      %v1297 = vsel %vm845, %v1189, 0.0
      %1298 = vadd.xlane.f32.xlu0 %v1297
      %v1299 = vpop.xlane.xlu0 %1298
      %v1300 = vsel %vm845, %v1190, 0.0
      %1301 = vadd.xlane.f32.xlu0 %v1300
      %v1302 = vpop.xlane.xlu0 %1301
      %v1303 = vsel %vm845, %v1191, 0.0
      %1304 = vadd.xlane.f32.xlu0 %v1303
      %v1305 = vpop.xlane.xlu0 %1304
      %v1306 = vsel %vm845, %v1192, 0.0
      %1307 = vadd.xlane.f32.xlu0 %v1306
      %v1308 = vpop.xlane.xlu0 %1307
      %v1309 = vsel %vm845, %v1193, 0.0
      %1310 = vadd.xlane.f32.xlu0 %v1309
      %v1311 = vpop.xlane.xlu0 %1310
      %v1312 = vsel %vm845, %v1194, 0.0
      %1313 = vadd.xlane.f32.xlu0 %v1312
      %v1314 = vpop.xlane.xlu0 %1313
      %v1315 = vsel %vm845, %v1195, 0.0
      %1316 = vadd.xlane.f32.xlu0 %v1315
      %v1317 = vpop.xlane.xlu0 %1316
      %v1318 = vsel %vm845, %v1196, 0.0
      %1319 = vadd.xlane.f32.xlu0 %v1318
      %v1320 = vpop.xlane.xlu0 %1319
      %v1321 = vsel %vm845, %v1197, 0.0
      %1322 = vadd.xlane.f32.xlu0 %v1321
      %v1323 = vpop.xlane.xlu0 %1322
      %v1324 = vsel %vm845, %v1198, 0.0
      %1325 = vadd.xlane.f32.xlu0 %v1324
      %v1326 = vpop.xlane.xlu0 %1325
      %v1327 = vsel %vm845, %v1199, 0.0
      %1328 = vadd.xlane.f32.xlu0 %v1327
      %v1329 = vpop.xlane.xlu0 %1328
      %v1330 = vsel %vm845, %v1200, 0.0
      %1331 = vadd.xlane.f32.xlu0 %v1330
      %v1332 = vpop.xlane.xlu0 %1331
      %v1333 = vsel %vm845, %v1201, 0.0
      %1334 = vadd.xlane.f32.xlu0 %v1333
      %v1335 = vpop.xlane.xlu0 %1334
      %v1336 = vsel %vm845, %v1202, 0.0
      %1337 = vadd.xlane.f32.xlu0 %v1336
      %v1338 = vpop.xlane.xlu0 %1337
      %v1339 = vsel %vm845, %v1203, 0.0
      %1340 = vadd.xlane.f32.xlu0 %v1339
      %v1341 = vpop.xlane.xlu0 %1340
      %v1342 = vsel %vm845, %v1204, 0.0
      %1343 = vadd.xlane.f32.xlu0 %v1342
      %v1344 = vpop.xlane.xlu0 %1343
      %v1345 = vsel %vm845, %v1205, 0.0
      %1346 = vadd.xlane.f32.xlu0 %v1345
      %v1347 = vpop.xlane.xlu0 %1346
      %v1348 = vsel %vm845, %v1206, 0.0
      %1349 = vadd.xlane.f32.xlu0 %v1348
      %v1350 = vpop.xlane.xlu0 %1349
      %v1351 = vsel %vm845, %v1207, 0.0
      %1352 = vadd.xlane.f32.xlu0 %v1351
      %v1353 = vpop.xlane.xlu0 %1352
      %v1354 = vsel %vm845, %v1208, 0.0
      %1355 = vadd.xlane.f32.xlu0 %v1354
      %v1356 = vpop.xlane.xlu0 %1355
      %v1357 = vsel %vm845, %v1209, 0.0
      %1358 = vadd.xlane.f32.xlu0 %v1357
      %v1359 = vpop.xlane.xlu0 %1358
      %v1360 = vsel %vm845, %v1210, 0.0
      %1361 = vadd.xlane.f32.xlu0 %v1360
      %v1362 = vpop.xlane.xlu0 %1361
      %v1363 = vsel %vm845, %v1211, 0.0
      %1364 = vadd.xlane.f32.xlu0 %v1363
      %v1365 = vpop.xlane.xlu0 %1364
      %v1366 = vsel %vm845, %v1212, 0.0
      %1367 = vadd.xlane.f32.xlu0 %v1366
      %v1368 = vpop.xlane.xlu0 %1367
      %v1369 = vsel %vm845, %v1213, 0.0
      %1370 = vadd.xlane.f32.xlu0 %v1369
      %v1371 = vpop.xlane.xlu0 %1370
      %v1372 = vsel %vm845, %v1214, 0.0
      %1373 = vadd.xlane.f32.xlu0 %v1372
      %v1374 = vpop.xlane.xlu0 %1373
      %v1375 = vsel %vm845, %v1215, 0.0
      %1376 = vadd.xlane.f32.xlu0 %v1375
      %v1377 = vpop.xlane.xlu0 %1376
      %v1378 = vsel %vm845, %v1216, 0.0
      %1379 = vadd.xlane.f32.xlu0 %v1378
      %v1380 = vpop.xlane.xlu0 %1379
      %v1381 = vsel %vm845, %v1217, 0.0
      %1382 = vadd.xlane.f32.xlu0 %v1381
      %v1383 = vpop.xlane.xlu0 %1382
      %v1384 = vsel %vm845, %v1218, 0.0
      %1385 = vadd.xlane.f32.xlu0 %v1384
      %v1386 = vpop.xlane.xlu0 %1385
      %v1387 = vsel %vm845, %v1219, 0.0
      %1388 = vadd.xlane.f32.xlu0 %v1387
      %v1389 = vpop.xlane.xlu0 %1388
      %v1390 = vsel %vm845, %v1220, 0.0
      %1391 = vadd.xlane.f32.xlu0 %v1390
      %v1392 = vpop.xlane.xlu0 %1391
      %v1393 = vsel %vm845, %v1221, 0.0
      %1394 = vadd.xlane.f32.xlu0 %v1393
      %v1395 = vpop.xlane.xlu0 %1394
      %v1396 = vsel %vm845, %v1222, 0.0
      %1397 = vadd.xlane.f32.xlu0 %v1396
      %v1398 = vpop.xlane.xlu0 %1397
      %v1399 = vsel %vm845, %v1223, 0.0
      %1400 = vadd.xlane.f32.xlu0 %v1399
      %v1401 = vpop.xlane.xlu0 %1400
      %v1402 = vsel %vm845, %v1224, 0.0
      %1403 = vadd.xlane.f32.xlu0 %v1402
      %v1404 = vpop.xlane.xlu0 %1403
      %v1405 = vsel %vm845, %v1225, 0.0
      %1406 = vadd.xlane.f32.xlu0 %v1405
      %v1407 = vpop.xlane.xlu0 %1406
      %v1408 = vsel %vm845, %v1226, 0.0
      %1409 = vadd.xlane.f32.xlu0 %v1408
      %v1410 = vpop.xlane.xlu0 %1409
      %v1411 = vsel %vm845, %v1227, 0.0
      %1412 = vadd.xlane.f32.xlu0 %v1411
      %v1413 = vpop.xlane.xlu0 %1412
      %v1414 = vsel %vm845, %v1228, 0.0
      %1415 = vadd.xlane.f32.xlu0 %v1414
      %v1416 = vpop.xlane.xlu0 %1415
      %v1417 = vsel %vm845, %v1229, 0.0
      %1418 = vadd.xlane.f32.xlu0 %v1417
      %v1419 = vpop.xlane.xlu0 %1418
      %v1420 = vsel %vm845, %v1230, 0.0
      %1421 = vadd.xlane.f32.xlu0 %v1420
      %v1422 = vpop.xlane.xlu0 %1421
      %v1423 = vmul.f32 %v1233, %v1038
      %v1424 = vmul.f32 %v1236, %v1038
      %v1425 = vmul.f32 %v1239, %v1038
      %v1426 = vmul.f32 %v1242, %v1038
      %v1427 = vmul.f32 %v1245, %v1038
      %v1428 = vmul.f32 %v1248, %v1038
      %v1429 = vmul.f32 %v1251, %v1038
      %v1430 = vmul.f32 %v1254, %v1038
      %v1431 = vmul.f32 %v1257, %v1038
      %v1432 = vmul.f32 %v1260, %v1038
      %v1433 = vmul.f32 %v1263, %v1038
      %v1434 = vmul.f32 %v1266, %v1038
      %v1435 = vmul.f32 %v1269, %v1038
      %v1436 = vmul.f32 %v1272, %v1038
      %v1437 = vmul.f32 %v1275, %v1038
      %v1438 = vmul.f32 %v1278, %v1038
      %v1439 = vmul.f32 %v1281, %v1038
      %v1440 = vmul.f32 %v1284, %v1038
      %v1441 = vmul.f32 %v1287, %v1038
      %v1442 = vmul.f32 %v1290, %v1038
      %v1443 = vmul.f32 %v1293, %v1038
      %v1444 = vmul.f32 %v1296, %v1038
      %v1445 = vmul.f32 %v1299, %v1038
      %v1446 = vmul.f32 %v1302, %v1038
      %v1447 = vmul.f32 %v1305, %v1038
      %v1448 = vmul.f32 %v1308, %v1038
      %v1449 = vmul.f32 %v1311, %v1038
      %v1450 = vmul.f32 %v1314, %v1038
      %v1451 = vmul.f32 %v1317, %v1038
      %v1452 = vmul.f32 %v1320, %v1038
      %v1453 = vmul.f32 %v1323, %v1038
      %v1454 = vmul.f32 %v1326, %v1038
      %v1455 = vmul.f32 %v1329, %v1038
      %v1456 = vmul.f32 %v1332, %v1038
      %v1457 = vmul.f32 %v1335, %v1038
      %v1458 = vmul.f32 %v1338, %v1038
      %v1459 = vmul.f32 %v1341, %v1038
      %v1460 = vmul.f32 %v1344, %v1038
      %v1461 = vmul.f32 %v1347, %v1038
      %v1462 = vmul.f32 %v1350, %v1038
      %v1463 = vmul.f32 %v1353, %v1038
      %v1464 = vmul.f32 %v1356, %v1038
      %v1465 = vmul.f32 %v1359, %v1038
      %v1466 = vmul.f32 %v1362, %v1038
      %v1467 = vmul.f32 %v1365, %v1038
      %v1468 = vmul.f32 %v1368, %v1038
      %v1469 = vmul.f32 %v1371, %v1038
      %v1470 = vmul.f32 %v1374, %v1038
      %v1471 = vmul.f32 %v1377, %v1038
      %v1472 = vmul.f32 %v1380, %v1038
      %v1473 = vmul.f32 %v1383, %v1038
      %v1474 = vmul.f32 %v1386, %v1038
      %v1475 = vmul.f32 %v1389, %v1038
      %v1476 = vmul.f32 %v1392, %v1038
      %v1477 = vmul.f32 %v1395, %v1038
      %v1478 = vmul.f32 %v1398, %v1038
      %v1479 = vmul.f32 %v1401, %v1038
      %v1480 = vmul.f32 %v1404, %v1038
      %v1481 = vmul.f32 %v1407, %v1038
      %v1482 = vmul.f32 %v1410, %v1038
      %v1483 = vmul.f32 %v1413, %v1038
      %v1484 = vmul.f32 %v1416, %v1038
      %v1485 = vmul.f32 %v1419, %v1038
      %v1486 = vmul.f32 %v1422, %v1038
      %v1487 = vadd.f32 %v1423, 1e-05
      %v1488 = vadd.f32 %v1424, 1e-05
      %v1489 = vadd.f32 %v1425, 1e-05
      %v1490 = vadd.f32 %v1426, 1e-05
      %v1491 = vadd.f32 %v1427, 1e-05
      %v1492 = vadd.f32 %v1428, 1e-05
      %v1493 = vadd.f32 %v1429, 1e-05
      %v1494 = vadd.f32 %v1430, 1e-05
      %v1495 = vadd.f32 %v1431, 1e-05
      %v1496 = vadd.f32 %v1432, 1e-05
      %v1497 = vadd.f32 %v1433, 1e-05
      %v1498 = vadd.f32 %v1434, 1e-05
      %v1499 = vadd.f32 %v1435, 1e-05
      %v1500 = vadd.f32 %v1436, 1e-05
      %v1501 = vadd.f32 %v1437, 1e-05
      %v1502 = vadd.f32 %v1438, 1e-05
      %v1503 = vadd.f32 %v1439, 1e-05
      %v1504 = vadd.f32 %v1440, 1e-05
      %v1505 = vadd.f32 %v1441, 1e-05
      %v1506 = vadd.f32 %v1442, 1e-05
      %v1507 = vadd.f32 %v1443, 1e-05
      %v1508 = vadd.f32 %v1444, 1e-05
      %v1509 = vadd.f32 %v1445, 1e-05
      %v1510 = vadd.f32 %v1446, 1e-05
      %v1511 = vadd.f32 %v1447, 1e-05
      %v1512 = vadd.f32 %v1448, 1e-05
      %v1513 = vadd.f32 %v1449, 1e-05
      %v1514 = vadd.f32 %v1450, 1e-05
      %v1515 = vadd.f32 %v1451, 1e-05
      %v1516 = vadd.f32 %v1452, 1e-05
      %v1517 = vadd.f32 %v1453, 1e-05
      %v1518 = vadd.f32 %v1454, 1e-05
      %v1519 = vadd.f32 %v1455, 1e-05
      %v1520 = vadd.f32 %v1456, 1e-05
      %v1521 = vadd.f32 %v1457, 1e-05
      %v1522 = vadd.f32 %v1458, 1e-05
      %v1523 = vadd.f32 %v1459, 1e-05
      %v1524 = vadd.f32 %v1460, 1e-05
      %v1525 = vadd.f32 %v1461, 1e-05
      %v1526 = vadd.f32 %v1462, 1e-05
      %v1527 = vadd.f32 %v1463, 1e-05
      %v1528 = vadd.f32 %v1464, 1e-05
      %v1529 = vadd.f32 %v1465, 1e-05
      %v1530 = vadd.f32 %v1466, 1e-05
      %v1531 = vadd.f32 %v1467, 1e-05
      %v1532 = vadd.f32 %v1468, 1e-05
      %v1533 = vadd.f32 %v1469, 1e-05
      %v1534 = vadd.f32 %v1470, 1e-05
      %v1535 = vadd.f32 %v1471, 1e-05
      %v1536 = vadd.f32 %v1472, 1e-05
      %v1537 = vadd.f32 %v1473, 1e-05
      %v1538 = vadd.f32 %v1474, 1e-05
      %v1539 = vadd.f32 %v1475, 1e-05
      %v1540 = vadd.f32 %v1476, 1e-05
      %v1541 = vadd.f32 %v1477, 1e-05
      %v1542 = vadd.f32 %v1478, 1e-05
      %v1543 = vadd.f32 %v1479, 1e-05
      %v1544 = vadd.f32 %v1480, 1e-05
      %v1545 = vadd.f32 %v1481, 1e-05
      %v1546 = vadd.f32 %v1482, 1e-05
      %v1547 = vadd.f32 %v1483, 1e-05
      %v1548 = vadd.f32 %v1484, 1e-05
      %v1549 = vadd.f32 %v1485, 1e-05
      %v1550 = vadd.f32 %v1486, 1e-05
      %v1551 = vrsqrt.pop %v1487
      %v1552 = vrsqrt.pop %v1488
      %v1553 = vrsqrt.pop %v1489
      %v1554 = vrsqrt.pop %v1490
      %v1555 = vrsqrt.pop %v1491
      %v1556 = vrsqrt.pop %v1492
      %v1557 = vrsqrt.pop %v1493
      %v1558 = vrsqrt.pop %v1494
      %v1559 = vrsqrt.pop %v1495
      %v1560 = vrsqrt.pop %v1496
      %v1561 = vrsqrt.pop %v1497
      %v1562 = vrsqrt.pop %v1498
      %v1563 = vrsqrt.pop %v1499
      %v1564 = vrsqrt.pop %v1500
      %v1565 = vrsqrt.pop %v1501
      %v1566 = vrsqrt.pop %v1502
      %v1567 = vrsqrt.pop %v1503
      %v1568 = vrsqrt.pop %v1504
      %v1569 = vrsqrt.pop %v1505
      %v1570 = vrsqrt.pop %v1506
      %v1571 = vrsqrt.pop %v1507
      %v1572 = vrsqrt.pop %v1508
      %v1573 = vrsqrt.pop %v1509
      %v1574 = vrsqrt.pop %v1510
      %v1575 = vrsqrt.pop %v1511
      %v1576 = vrsqrt.pop %v1512
      %v1577 = vrsqrt.pop %v1513
      %v1578 = vrsqrt.pop %v1514
      %v1579 = vrsqrt.pop %v1515
      %v1580 = vrsqrt.pop %v1516
      %v1581 = vrsqrt.pop %v1517
      %v1582 = vrsqrt.pop %v1518
      %v1583 = vrsqrt.pop %v1519
      %v1584 = vrsqrt.pop %v1520
      %v1585 = vrsqrt.pop %v1521
      %v1586 = vrsqrt.pop %v1522
      %v1587 = vrsqrt.pop %v1523
      %v1588 = vrsqrt.pop %v1524
      %v1589 = vrsqrt.pop %v1525
      %v1590 = vrsqrt.pop %v1526
      %v1591 = vrsqrt.pop %v1527
      %v1592 = vrsqrt.pop %v1528
      %v1593 = vrsqrt.pop %v1529
      %v1594 = vrsqrt.pop %v1530
      %v1595 = vrsqrt.pop %v1531
      %v1596 = vrsqrt.pop %v1532
      %v1597 = vrsqrt.pop %v1533
      %v1598 = vrsqrt.pop %v1534
      %v1599 = vrsqrt.pop %v1535
      %v1600 = vrsqrt.pop %v1536
      %v1601 = vrsqrt.pop %v1537
      %v1602 = vrsqrt.pop %v1538
      %v1603 = vrsqrt.pop %v1539
      %v1604 = vrsqrt.pop %v1540
      %v1605 = vrsqrt.pop %v1541
      %v1606 = vrsqrt.pop %v1542
      %v1607 = vrsqrt.pop %v1543
      %v1608 = vrsqrt.pop %v1544
      %v1609 = vrsqrt.pop %v1545
      %v1610 = vrsqrt.pop %v1546
      %v1611 = vrsqrt.pop %v1547
      %v1612 = vrsqrt.pop %v1548
      %v1613 = vrsqrt.pop %v1549
      %v1614 = vrsqrt.pop %v1550
      %v1615 = vmul.f32 %v1103, %v1551
      %v1616 = vmul.f32 %v1104, %v1552
      %v1617 = vmul.f32 %v1105, %v1553
      %v1618 = vmul.f32 %v1106, %v1554
      %v1619 = vmul.f32 %v1107, %v1555
      %v1620 = vmul.f32 %v1108, %v1556
      %v1621 = vmul.f32 %v1109, %v1557
      %v1622 = vmul.f32 %v1110, %v1558
      %v1623 = vmul.f32 %v1111, %v1559
      %v1624 = vmul.f32 %v1112, %v1560
      %v1625 = vmul.f32 %v1113, %v1561
      %v1626 = vmul.f32 %v1114, %v1562
      %v1627 = vmul.f32 %v1115, %v1563
      %v1628 = vmul.f32 %v1116, %v1564
      %v1629 = vmul.f32 %v1117, %v1565
      %v1630 = vmul.f32 %v1118, %v1566
      %v1631 = vmul.f32 %v1119, %v1567
      %v1632 = vmul.f32 %v1120, %v1568
      %v1633 = vmul.f32 %v1121, %v1569
      %v1634 = vmul.f32 %v1122, %v1570
      %v1635 = vmul.f32 %v1123, %v1571
      %v1636 = vmul.f32 %v1124, %v1572
      %v1637 = vmul.f32 %v1125, %v1573
      %v1638 = vmul.f32 %v1126, %v1574
      %v1639 = vmul.f32 %v1127, %v1575
      %v1640 = vmul.f32 %v1128, %v1576
      %v1641 = vmul.f32 %v1129, %v1577
      %v1642 = vmul.f32 %v1130, %v1578
      %v1643 = vmul.f32 %v1131, %v1579
      %v1644 = vmul.f32 %v1132, %v1580
      %v1645 = vmul.f32 %v1133, %v1581
      %v1646 = vmul.f32 %v1134, %v1582
      %v1647 = vmul.f32 %v1135, %v1583
      %v1648 = vmul.f32 %v1136, %v1584
      %v1649 = vmul.f32 %v1137, %v1585
      %v1650 = vmul.f32 %v1138, %v1586
      %v1651 = vmul.f32 %v1139, %v1587
      %v1652 = vmul.f32 %v1140, %v1588
      %v1653 = vmul.f32 %v1141, %v1589
      %v1654 = vmul.f32 %v1142, %v1590
      %v1655 = vmul.f32 %v1143, %v1591
      %v1656 = vmul.f32 %v1144, %v1592
      %v1657 = vmul.f32 %v1145, %v1593
      %v1658 = vmul.f32 %v1146, %v1594
      %v1659 = vmul.f32 %v1147, %v1595
      %v1660 = vmul.f32 %v1148, %v1596
      %v1661 = vmul.f32 %v1149, %v1597
      %v1662 = vmul.f32 %v1150, %v1598
      %v1663 = vmul.f32 %v1151, %v1599
      %v1664 = vmul.f32 %v1152, %v1600
      %v1665 = vmul.f32 %v1153, %v1601
      %v1666 = vmul.f32 %v1154, %v1602
      %v1667 = vmul.f32 %v1155, %v1603
      %v1668 = vmul.f32 %v1156, %v1604
      %v1669 = vmul.f32 %v1157, %v1605
      %v1670 = vmul.f32 %v1158, %v1606
      %v1671 = vmul.f32 %v1159, %v1607
      %v1672 = vmul.f32 %v1160, %v1608
      %v1673 = vmul.f32 %v1161, %v1609
      %v1674 = vmul.f32 %v1162, %v1610
      %v1675 = vmul.f32 %v1163, %v1611
      %v1676 = vmul.f32 %v1164, %v1612
      %v1677 = vmul.f32 %v1165, %v1613
      %v1678 = vmul.f32 %v1166, %v1614
      %v1679 = vld [vmem:[%s3] sm:$0x1]
      %v1681 = vlaneseq
      %v1682 = vshrl.u32 %v1681, 7
      %v1683 = vsub.s32 0, %v1682
      %v1684 = vrot.slane %v1679, %v1683
      %v1686 = vmul.f32 %v1615, %v1684
      %v1687 = vmul.f32 %v1616, %v1684
      %v1688 = vmul.f32 %v1617, %v1684
      %v1689 = vmul.f32 %v1618, %v1684
      %v1690 = vmul.f32 %v1619, %v1684
      %v1691 = vmul.f32 %v1620, %v1684
      %v1692 = vmul.f32 %v1621, %v1684
      %v1693 = vmul.f32 %v1622, %v1684
      %v1694 = vmul.f32 %v1623, %v1684
      %v1695 = vmul.f32 %v1624, %v1684
      %v1696 = vmul.f32 %v1625, %v1684
      %v1697 = vmul.f32 %v1626, %v1684
      %v1698 = vmul.f32 %v1627, %v1684
      %v1699 = vmul.f32 %v1628, %v1684
      %v1700 = vmul.f32 %v1629, %v1684
      %v1701 = vmul.f32 %v1630, %v1684
      %v1702 = vmul.f32 %v1631, %v1684
      %v1703 = vmul.f32 %v1632, %v1684
      %v1704 = vmul.f32 %v1633, %v1684
      %v1705 = vmul.f32 %v1634, %v1684
      %v1706 = vmul.f32 %v1635, %v1684
      %v1707 = vmul.f32 %v1636, %v1684
      %v1708 = vmul.f32 %v1637, %v1684
      %v1709 = vmul.f32 %v1638, %v1684
      %v1710 = vmul.f32 %v1639, %v1684
      %v1711 = vmul.f32 %v1640, %v1684
      %v1712 = vmul.f32 %v1641, %v1684
      %v1713 = vmul.f32 %v1642, %v1684
      %v1714 = vmul.f32 %v1643, %v1684
      %v1715 = vmul.f32 %v1644, %v1684
      %v1716 = vmul.f32 %v1645, %v1684
      %v1717 = vmul.f32 %v1646, %v1684
      %v1718 = vmul.f32 %v1647, %v1684
      %v1719 = vmul.f32 %v1648, %v1684
      %v1720 = vmul.f32 %v1649, %v1684
      %v1721 = vmul.f32 %v1650, %v1684
      %v1722 = vmul.f32 %v1651, %v1684
      %v1723 = vmul.f32 %v1652, %v1684
      %v1724 = vmul.f32 %v1653, %v1684
      %v1725 = vmul.f32 %v1654, %v1684
      %v1726 = vmul.f32 %v1655, %v1684
      %v1727 = vmul.f32 %v1656, %v1684
      %v1728 = vmul.f32 %v1657, %v1684
      %v1729 = vmul.f32 %v1658, %v1684
      %v1730 = vmul.f32 %v1659, %v1684
      %v1731 = vmul.f32 %v1660, %v1684
      %v1732 = vmul.f32 %v1661, %v1684
      %v1733 = vmul.f32 %v1662, %v1684
      %v1734 = vmul.f32 %v1663, %v1684
      %v1735 = vmul.f32 %v1664, %v1684
      %v1736 = vmul.f32 %v1665, %v1684
      %v1737 = vmul.f32 %v1666, %v1684
      %v1738 = vmul.f32 %v1667, %v1684
      %v1739 = vmul.f32 %v1668, %v1684
      %v1740 = vmul.f32 %v1669, %v1684
      %v1741 = vmul.f32 %v1670, %v1684
      %v1742 = vmul.f32 %v1671, %v1684
      %v1743 = vmul.f32 %v1672, %v1684
      %v1744 = vmul.f32 %v1673, %v1684
      %v1745 = vmul.f32 %v1674, %v1684
      %v1746 = vmul.f32 %v1675, %v1684
      %v1747 = vmul.f32 %v1676, %v1684
      %v1748 = vmul.f32 %v1677, %v1684
      %v1749 = vmul.f32 %v1678, %v1684
      %v1750 = vld [vmem:[%s4] sm:$0x1]
      %v1752 = vlaneseq
      %v1753 = vshrl.u32 %v1752, 7
      %v1754 = vsub.s32 0, %v1753
      %v1755 = vrot.slane %v1750, %v1754
      %v1757 = vadd.f32 %v1686, %v1755
      %v1758 = vadd.f32 %v1687, %v1755
      %v1759 = vadd.f32 %v1688, %v1755
      %v1760 = vadd.f32 %v1689, %v1755
      %v1761 = vadd.f32 %v1690, %v1755
      %v1762 = vadd.f32 %v1691, %v1755
      %v1763 = vadd.f32 %v1692, %v1755
      %v1764 = vadd.f32 %v1693, %v1755
      %v1765 = vadd.f32 %v1694, %v1755
      %v1766 = vadd.f32 %v1695, %v1755
      %v1767 = vadd.f32 %v1696, %v1755
      %v1768 = vadd.f32 %v1697, %v1755
      %v1769 = vadd.f32 %v1698, %v1755
      %v1770 = vadd.f32 %v1699, %v1755
      %v1771 = vadd.f32 %v1700, %v1755
      %v1772 = vadd.f32 %v1701, %v1755
      %v1773 = vadd.f32 %v1702, %v1755
      %v1774 = vadd.f32 %v1703, %v1755
      %v1775 = vadd.f32 %v1704, %v1755
      %v1776 = vadd.f32 %v1705, %v1755
      %v1777 = vadd.f32 %v1706, %v1755
      %v1778 = vadd.f32 %v1707, %v1755
      %v1779 = vadd.f32 %v1708, %v1755
      %v1780 = vadd.f32 %v1709, %v1755
      %v1781 = vadd.f32 %v1710, %v1755
      %v1782 = vadd.f32 %v1711, %v1755
      %v1783 = vadd.f32 %v1712, %v1755
      %v1784 = vadd.f32 %v1713, %v1755
      %v1785 = vadd.f32 %v1714, %v1755
      %v1786 = vadd.f32 %v1715, %v1755
      %v1787 = vadd.f32 %v1716, %v1755
      %v1788 = vadd.f32 %v1717, %v1755
      %v1789 = vadd.f32 %v1718, %v1755
      %v1790 = vadd.f32 %v1719, %v1755
      %v1791 = vadd.f32 %v1720, %v1755
      %v1792 = vadd.f32 %v1721, %v1755
      %v1793 = vadd.f32 %v1722, %v1755
      %v1794 = vadd.f32 %v1723, %v1755
      %v1795 = vadd.f32 %v1724, %v1755
      %v1796 = vadd.f32 %v1725, %v1755
      %v1797 = vadd.f32 %v1726, %v1755
      %v1798 = vadd.f32 %v1727, %v1755
      %v1799 = vadd.f32 %v1728, %v1755
      %v1800 = vadd.f32 %v1729, %v1755
      %v1801 = vadd.f32 %v1730, %v1755
      %v1802 = vadd.f32 %v1731, %v1755
      %v1803 = vadd.f32 %v1732, %v1755
      %v1804 = vadd.f32 %v1733, %v1755
      %v1805 = vadd.f32 %v1734, %v1755
      %v1806 = vadd.f32 %v1735, %v1755
      %v1807 = vadd.f32 %v1736, %v1755
      %v1808 = vadd.f32 %v1737, %v1755
      %v1809 = vadd.f32 %v1738, %v1755
      %v1810 = vadd.f32 %v1739, %v1755
      %v1811 = vadd.f32 %v1740, %v1755
      %v1812 = vadd.f32 %v1741, %v1755
      %v1813 = vadd.f32 %v1742, %v1755
      %v1814 = vadd.f32 %v1743, %v1755
      %v1815 = vadd.f32 %v1744, %v1755
      %v1816 = vadd.f32 %v1745, %v1755
      %v1817 = vadd.f32 %v1746, %v1755
      %v1818 = vadd.f32 %v1747, %v1755
      %v1819 = vadd.f32 %v1748, %v1755
      %v1820 = vadd.f32 %v1749, %v1755
      %1821 = vst.msk [vmem:[%s226] sm:$0xff] %vm845, %v1757
      %1822 = vst.msk [vmem:[%s226 + $0x8] sm:$0xff] %vm845, %v1758
      %1823 = vst.msk [vmem:[%s226 + $0x10] sm:$0xff] %vm845, %v1759
      %1824 = vst.msk [vmem:[%s226 + $0x18] sm:$0xff] %vm845, %v1760
      %1825 = vst.msk [vmem:[%s226 + $0x20] sm:$0xff] %vm845, %v1761
      %1826 = vst.msk [vmem:[%s226 + $0x28] sm:$0xff] %vm845, %v1762
      %1827 = vst.msk [vmem:[%s226 + $0x30] sm:$0xff] %vm845, %v1763
      %1828 = vst.msk [vmem:[%s226 + $0x38] sm:$0xff] %vm845, %v1764
      %1829 = vst.msk [vmem:[%s226 + $0x40] sm:$0xff] %vm845, %v1765
      %1830 = vst.msk [vmem:[%s226 + $0x48] sm:$0xff] %vm845, %v1766
      %1831 = vst.msk [vmem:[%s226 + $0x50] sm:$0xff] %vm845, %v1767
      %1832 = vst.msk [vmem:[%s226 + $0x58] sm:$0xff] %vm845, %v1768
      %1833 = vst.msk [vmem:[%s226 + $0x60] sm:$0xff] %vm845, %v1769
      %1834 = vst.msk [vmem:[%s226 + $0x68] sm:$0xff] %vm845, %v1770
      %1835 = vst.msk [vmem:[%s226 + $0x70] sm:$0xff] %vm845, %v1771
      %1836 = vst.msk [vmem:[%s226 + $0x78] sm:$0xff] %vm845, %v1772
      %1837 = vst.msk [vmem:[%s226 + $0x80] sm:$0xff] %vm845, %v1773
      %1838 = vst.msk [vmem:[%s226 + $0x88] sm:$0xff] %vm845, %v1774
      %1839 = vst.msk [vmem:[%s226 + $0x90] sm:$0xff] %vm845, %v1775
      %1840 = vst.msk [vmem:[%s226 + $0x98] sm:$0xff] %vm845, %v1776
      %1841 = vst.msk [vmem:[%s226 + $0xa0] sm:$0xff] %vm845, %v1777
      %1842 = vst.msk [vmem:[%s226 + $0xa8] sm:$0xff] %vm845, %v1778
      %1843 = vst.msk [vmem:[%s226 + $0xb0] sm:$0xff] %vm845, %v1779
      %1844 = vst.msk [vmem:[%s226 + $0xb8] sm:$0xff] %vm845, %v1780
      %1845 = vst.msk [vmem:[%s226 + $0xc0] sm:$0xff] %vm845, %v1781
      %1846 = vst.msk [vmem:[%s226 + $0xc8] sm:$0xff] %vm845, %v1782
      %1847 = vst.msk [vmem:[%s226 + $0xd0] sm:$0xff] %vm845, %v1783
      %1848 = vst.msk [vmem:[%s226 + $0xd8] sm:$0xff] %vm845, %v1784
      %1849 = vst.msk [vmem:[%s226 + $0xe0] sm:$0xff] %vm845, %v1785
      %1850 = vst.msk [vmem:[%s226 + $0xe8] sm:$0xff] %vm845, %v1786
      %1851 = vst.msk [vmem:[%s226 + $0xf0] sm:$0xff] %vm845, %v1787
      %1852 = vst.msk [vmem:[%s226 + $0xf8] sm:$0xff] %vm845, %v1788
      %1853 = vst.msk [vmem:[%s226 + $0x100] sm:$0xff] %vm845, %v1789
      %1854 = vst.msk [vmem:[%s226 + $0x108] sm:$0xff] %vm845, %v1790
      %1855 = vst.msk [vmem:[%s226 + $0x110] sm:$0xff] %vm845, %v1791
      %1856 = vst.msk [vmem:[%s226 + $0x118] sm:$0xff] %vm845, %v1792
      %1857 = vst.msk [vmem:[%s226 + $0x120] sm:$0xff] %vm845, %v1793
      %1858 = vst.msk [vmem:[%s226 + $0x128] sm:$0xff] %vm845, %v1794
      %1859 = vst.msk [vmem:[%s226 + $0x130] sm:$0xff] %vm845, %v1795
      %1860 = vst.msk [vmem:[%s226 + $0x138] sm:$0xff] %vm845, %v1796
      %1861 = vst.msk [vmem:[%s226 + $0x140] sm:$0xff] %vm845, %v1797
      %1862 = vst.msk [vmem:[%s226 + $0x148] sm:$0xff] %vm845, %v1798
      %1863 = vst.msk [vmem:[%s226 + $0x150] sm:$0xff] %vm845, %v1799
      %1864 = vst.msk [vmem:[%s226 + $0x158] sm:$0xff] %vm845, %v1800
      %1865 = vst.msk [vmem:[%s226 + $0x160] sm:$0xff] %vm845, %v1801
      %1866 = vst.msk [vmem:[%s226 + $0x168] sm:$0xff] %vm845, %v1802
      %1867 = vst.msk [vmem:[%s226 + $0x170] sm:$0xff] %vm845, %v1803
      %1868 = vst.msk [vmem:[%s226 + $0x178] sm:$0xff] %vm845, %v1804
      %1869 = vst.msk [vmem:[%s226 + $0x180] sm:$0xff] %vm845, %v1805
      %1870 = vst.msk [vmem:[%s226 + $0x188] sm:$0xff] %vm845, %v1806
      %1871 = vst.msk [vmem:[%s226 + $0x190] sm:$0xff] %vm845, %v1807
      %1872 = vst.msk [vmem:[%s226 + $0x198] sm:$0xff] %vm845, %v1808
      %1873 = vst.msk [vmem:[%s226 + $0x1a0] sm:$0xff] %vm845, %v1809
      %1874 = vst.msk [vmem:[%s226 + $0x1a8] sm:$0xff] %vm845, %v1810
      %1875 = vst.msk [vmem:[%s226 + $0x1b0] sm:$0xff] %vm845, %v1811
      %1876 = vst.msk [vmem:[%s226 + $0x1b8] sm:$0xff] %vm845, %v1812
      %1877 = vst.msk [vmem:[%s226 + $0x1c0] sm:$0xff] %vm845, %v1813
      %1878 = vst.msk [vmem:[%s226 + $0x1c8] sm:$0xff] %vm845, %v1814
      %1879 = vst.msk [vmem:[%s226 + $0x1d0] sm:$0xff] %vm845, %v1815
      %1880 = vst.msk [vmem:[%s226 + $0x1d8] sm:$0xff] %vm845, %v1816
      %1881 = vst.msk [vmem:[%s226 + $0x1e0] sm:$0xff] %vm845, %v1817
      %1882 = vst.msk [vmem:[%s226 + $0x1e8] sm:$0xff] %vm845, %v1818
      %1883 = vst.msk [vmem:[%s226 + $0x1f0] sm:$0xff] %vm845, %v1819
      %1884 = vst.msk [vmem:[%s226 + $0x1f8] sm:$0xff] %vm845, %v1820
      %s1885 = smul.u32 64, %s16
      %p1886 = scmp.lt.s32.totalorder %s1885, 127
      %s1887 = scalar_select %p1886, %s1885, 127
      %s1888 = smul.addr %s1887, 8
      %s1889 = scalar_lea.vmem %s5, %s1888
      // Predicated region
      $region41: #{patch_embed_3d.1} parent=39 // pred_check
        %p1890 = pneg %p144
      $region42: #{patch_embed_3d.1} parent=39 // pred_check_branch
        %1892 = sbr.rel (%p1890) target = $region44
      $region43: #{patch_embed_3d.1} parent=39 // pred_region
        %s1893 = smul.u32 64, %s16
      $region44: #{patch_embed_3d.1} parent=39 // pred_fallthru
        _
    $region40: #{patch_embed_3d.1} parent=5 // pred_fallthru
      _
    %p1894 = scmp.le.s32.totalorder 2, %s11
    // Predicated region
    $region45: #{patch_embed_3d.1} parent=5 // pred_check
      %p1895 = pneg %p1894
    $region46: #{patch_embed_3d.1} parent=5 // pred_check_branch
      %1897 = sbr.rel (%p1895) target = $region48
    $region47: #{patch_embed_3d.1} parent=5 // pred_region
      %s1898 = ssub.s32 %s11, 2
      // Predicated region
      $region49: #{patch_embed_3d.1} parent=47 // pred_check
        %p1899 = pneg %p150
      $region50: #{patch_embed_3d.1} parent=47 // pred_check_branch
        %1901 = sbr.rel (%p1899) target = $region52
      $region51: #{patch_embed_3d.1} parent=47 // pred_region
        %s1902 = smul.u32 64, %s17
        %p1903 = scmp.lt.s32.totalorder %s1902, 127
        %s1904 = scalar_select %p1903, %s1902, 127
        %s1905 = smul.addr %s1904, 8
        %s1906 = scalar_lea.vmem %s5, %s1905
      $region52: #{patch_embed_3d.1} parent=47 // pred_fallthru
        _
    $region48: #{patch_embed_3d.1} parent=5 // pred_fallthru
      _
  $region6: #{patch_embed_3d.1} parent=0 // loop_footer
    %s15 = sadd.s32 1, %s11
  $region7: #{patch_embed_3d.1} parent=0 // loop_footer_branch
    %10 = sbr.rel target = $region3
  $region8: #{patch_embed_3d.1} parent=0 // loop_exit
    _

</llo_original>
